<compile_context>
chip_gen: v6e
topology: v6e:2x2x1
jax: 0.10.0
libtpu: 0.0.40
codegen_flags: <defaults>
</compile_context>

<pallas_src>
import functools

import jax
import jax.numpy as jnp
from jax.experimental import pallas as pl
from jax.experimental.pallas import tpu as pltpu

_LANES = 128


def _round_up(x, m):
    return (x + m - 1) // m * m


def _pick_tile_h(Ho, Wo, m_cap=512):
    """Largest divisor of Ho with TILE_H * Wo <= m_cap; prefer >= 2 row tiles."""
    best = 1
    for d in range(1, Ho + 1):
        if Ho % d == 0 and d * Wo <= m_cap:
            best = d
    if best == Ho and Ho > 1:
        for d in range(Ho - 1, 0, -1):
            if Ho % d == 0 and d * Wo <= m_cap:
                return d
    return best


def _conv_bn_relu_kernel(x_ref, w_ref, b_ref, o_ref, *, KH, KW):
    """Grid: (N, Ho // TILE_H); one (batch, output-row-tile) per step.

    x_ref: (1, Hp, Wp, Cin_p)        bf16 padded input (revisited across row tiles)
    w_ref: (KW*KH*Cin_p, Cout_p)     bf16 im2col weights with BN scale folded in
    b_ref: (1, Cout_p)               f32 folded BN bias
    o_ref: (1, TILE_H, Wo, Cout_p)   f32 output tile
    """
    Cin_p = x_ref.shape[-1]
    _, TILE_H, Wo, Cout_p = o_ref.shape
    M = TILE_H * Wo
    h0 = pl.multiple_of(pl.program_id(1) * TILE_H, TILE_H)

    pieces = []
    for kw in range(KW):
        # One W-shift (sublane relayout) per kw, shared by all KH taps.
        x_kw = x_ref[0, pl.ds(h0, TILE_H + KH - 1), pl.ds(kw, Wo), :]
        for kh in range(KH):
            # Leading-dim slice + leading-dim merge: layout-preserving (Wo % 8 == 0).
            pieces.append(x_kw[kh:kh + TILE_H].reshape(M, Cin_p))

    # Lane-aligned concat (each piece is a whole number of 128-lane tiles) ->
    # a single full-K MXU matmul per row tile.  K order = (kw, kh, cin),
    # matching the weight flattening in the wrapper.
    patch = jnp.concatenate(pieces, axis=-1)                  # (M, KW*KH*Cin_p)
    acc = jnp.dot(patch, w_ref[...], preferred_element_type=jnp.float32)

    # Fused epilogue: folded BN bias + ReLU (scale already folded into weights).
    y = jnp.maximum(acc + b_ref[0, :], 0.0)
    o_ref[0] = y.reshape(TILE_H, Wo, Cout_p).astype(o_ref.dtype)


def basic_conv2d(x_nchw, weight_oihw, gamma, beta, running_mean, running_var,
                 *, stride=1, padding=1, eps=1e-3):
    """Equivalent of BasicConv2d.forward (eval-mode BN), NCHW in / NCHW out."""
    if stride != 1:
        raise NotImplementedError("TODO(synk): stride != 1 not implemented")
    N, Cin, H, W = x_nchw.shape
    Cout, Cin_w, KH, KW = weight_oihw.shape
    assert Cin == Cin_w

    Cin_p = _round_up(Cin, _LANES)
    Cout_p = _round_up(Cout, _LANES)
    Hp, Wp = H + 2 * padding, W + 2 * padding
    Ho, Wo = Hp - KH + 1, Wp - KW + 1
    TILE_H = _pick_tile_h(Ho, Wo)
    assert Ho % TILE_H == 0

    # --- glue (plain JAX): layout, padding, BN folding, bf16 cast ---
    x_nhwc = jnp.transpose(x_nchw, (0, 2, 3, 1))
    x_p = jnp.pad(
        x_nhwc,
        ((0, 0), (padding, padding), (padding, padding), (0, Cin_p - Cin)),
    ).astype(jnp.bfloat16)

    scale = gamma / jnp.sqrt(running_var + eps)                 # (Cout,)
    bias = beta - running_mean * scale                          # (Cout,)
    w_hwio = jnp.transpose(weight_oihw, (2, 3, 1, 0)) * scale   # BN scale folded
    w_p = jnp.pad(
        w_hwio, ((0, 0), (0, 0), (0, Cin_p - Cin), (0, Cout_p - Cout))
    )                                                            # (KH,KW,Cin_p,Cout_p)
    # Flatten to im2col order (kw, kh, cin) x cout, matching the kernel's concat.
    w_mat = (jnp.transpose(w_p, (1, 0, 2, 3))
             .reshape(KW * KH * Cin_p, Cout_p)
             .astype(jnp.bfloat16))
    b_p = jnp.pad(bias, (0, Cout_p - Cout)).reshape(1, Cout_p).astype(jnp.float32)

    kernel = functools.partial(_conv_bn_relu_kernel, KH=KH, KW=KW)

    out_nhwc = pl.pallas_call(
        kernel,
        out_shape=jax.ShapeDtypeStruct((N, Ho, Wo, Cout_p), jnp.float32),
        grid_spec=pltpu.PrefetchScalarGridSpec(
            num_scalar_prefetch=0,
            grid=(N, Ho // TILE_H),
            in_specs=[
                # Full padded image per n; constant block index across row
                # tiles => DMA'd once per batch element (revisited).
                pl.BlockSpec((1, Hp, Wp, Cin_p), lambda n, ht: (n, 0, 0, 0)),
                pl.BlockSpec((KW * KH * Cin_p, Cout_p), lambda n, ht: (0, 0)),
                pl.BlockSpec((1, Cout_p), lambda n, ht: (0, 0)),
            ],
            out_specs=pl.BlockSpec((1, TILE_H, Wo, Cout_p),
                                   lambda n, ht: (n, ht, 0, 0)),
        ),
        compiler_params=pltpu.CompilerParams(
            dimension_semantics=("parallel", "parallel"),
            vmem_limit_bytes=64 * 1024 * 1024,
        ),
    )(x_p, w_mat, b_p)

    out = out_nhwc[..., :Cout]                    # drop channel padding
    return jnp.transpose(out, (0, 3, 1, 2))       # back to NCHW


def _reference(x_nchw, weight_oihw, gamma, beta, mean, var, *, padding=1,
               eps=1e-3):
    y = jax.lax.conv_general_dilated(
        x_nchw, weight_oihw, window_strides=(1, 1),
        padding=[(padding, padding), (padding, padding)],
        dimension_numbers=("NCHW", "OIHW", "NCHW"),
    )
    scale = (gamma / jnp.sqrt(var + eps)).reshape(1, -1, 1, 1)
    bias = (beta - mean * gamma / jnp.sqrt(var + eps)).reshape(1, -1, 1, 1)
    return jnp.maximum(y * scale + bias, 0.0)


if __name__ == "__main__":
    key = jax.random.PRNGKey(0)
    k_x, k_w, k_g, k_b, k_m, k_v = jax.random.split(key, 6)

    # Small synthetic config: in_channels=4, out_channels=8, kernel 3x3, pad 1.
    N, Cin, H, W = 2, 4, 16, 16
    Cout, KH, KW = 8, 3, 3
    padding, eps = 1, 1e-3

    x = jax.random.normal(k_x, (N, Cin, H, W), dtype=jnp.float32)

    # Deterministic conv weight init (kaiming-uniform-like bound).
    fan_in = Cin * KH * KW
    bound = 1.0 / (fan_in ** 0.5)
    weight = jax.random.uniform(
        k_w, (Cout, Cin, KH, KW), minval=-bound, maxval=bound,
        dtype=jnp.float32)

    # Non-trivial eval-mode BatchNorm state to exercise the folding path.
    gamma = jax.random.uniform(k_g, (Cout,), minval=0.8, maxval=1.2,
                               dtype=jnp.float32)
    beta = jax.random.uniform(k_b, (Cout,), minval=-0.1, maxval=0.1,
                              dtype=jnp.float32)
    running_mean = 0.1 * jax.random.normal(k_m, (Cout,), dtype=jnp.float32)
    running_var = jax.random.uniform(k_v, (Cout,), minval=0.5, maxval=1.5,
                                     dtype=jnp.float32)

    out = basic_conv2d(x, weight, gamma, beta, running_mean, running_var,
                       stride=1, padding=padding, eps=eps)
    out = jax.block_until_ready(out)

    ref = _reference(x, weight, gamma, beta, running_mean, running_var,
                     padding=padding, eps=eps)
    assert out.shape == (N, Cout, H, W)
    # bf16 activations/weights with f32 accumulation -> loosened tolerance
    # vs the pure-f32 reference.
    err = float(jnp.max(jnp.abs(out - ref)))
    assert jnp.allclose(out, ref, atol=3e-2, rtol=3e-2), err

    print("KERNEL_OK")
</pallas_src>

<mosaic_0001>
module attributes {stable_mosaic.version = 11 : i64} {
  func.func @_conv_bn_relu_kernel(%arg0: i32, %arg1: i32, %arg2: memref<1x18x18x128xbf16, #tpu.memory_space<vmem>>, %arg3: memref<1152x128xbf16, #tpu.memory_space<vmem>>, %arg4: memref<1x128xf32, #tpu.memory_space<vmem>>, %arg5: memref<1x8x16x128xf32, #tpu.memory_space<vmem>>) attributes {dimension_semantics = [#tpu.dimension_semantics<parallel>, #tpu.dimension_semantics<parallel>], iteration_bounds = array<i64: 2, 2>, scalar_prefetch = 0 : i64, scratch_operands = 0 : i64, tpu.core_type = #tpu.core_type<tc>, window_params = [{transform_indices = @transform_0, window_bounds = array<i64: 1, 18, 18, 128>}, {pipeline_mode = #tpu.pipeline_mode<synchronous>, transform_indices = @transform_1, window_bounds = array<i64: 1152, 128>}, {pipeline_mode = #tpu.pipeline_mode<synchronous>, transform_indices = @transform_2, window_bounds = array<i64: 1, 128>}, {transform_indices = @transform_3, window_bounds = array<i64: 1, 8, 16, 128>}]} {
    %c8_i32 = arith.constant 8 : i32
    %0 = arith.muli %arg1, %c8_i32 : i32
    %1 = tpu.assume_multiple %0, 8 : i32
    %c0 = arith.constant 0 : index
    %2 = arith.index_cast %1 : i32 to index
    %c0_0 = arith.constant 0 : index
    %c0_1 = arith.constant 0 : index
    %3 = vector.load %arg2[%c0, %2, %c0_0, %c0_1] : memref<1x18x18x128xbf16, #tpu.memory_space<vmem>>, vector<1x10x16x128xbf16>
    %4 = vector.shape_cast %3 : vector<1x10x16x128xbf16> to vector<10x16x128xbf16>
    %5 = vector.extract_strided_slice %4 {offsets = [0, 0, 0], sizes = [8, 16, 128], strides = [1, 1, 1]} : vector<10x16x128xbf16> to vector<8x16x128xbf16>
    %6 = vector.shape_cast %5 : vector<8x16x128xbf16> to vector<128x128xbf16>
    %7 = vector.extract_strided_slice %4 {offsets = [1, 0, 0], sizes = [8, 16, 128], strides = [1, 1, 1]} : vector<10x16x128xbf16> to vector<8x16x128xbf16>
    %8 = vector.shape_cast %7 : vector<8x16x128xbf16> to vector<128x128xbf16>
    %9 = vector.extract_strided_slice %4 {offsets = [2, 0, 0], sizes = [8, 16, 128], strides = [1, 1, 1]} : vector<10x16x128xbf16> to vector<8x16x128xbf16>
    %10 = vector.shape_cast %9 : vector<8x16x128xbf16> to vector<128x128xbf16>
    %c0_2 = arith.constant 0 : index
    %11 = arith.index_cast %1 : i32 to index
    %c1 = arith.constant 1 : index
    %c0_3 = arith.constant 0 : index
    %12 = vector.load %arg2[%c0_2, %11, %c1, %c0_3] : memref<1x18x18x128xbf16, #tpu.memory_space<vmem>>, vector<1x10x16x128xbf16>
    %13 = vector.shape_cast %12 : vector<1x10x16x128xbf16> to vector<10x16x128xbf16>
    %14 = vector.extract_strided_slice %13 {offsets = [0, 0, 0], sizes = [8, 16, 128], strides = [1, 1, 1]} : vector<10x16x128xbf16> to vector<8x16x128xbf16>
    %15 = vector.shape_cast %14 : vector<8x16x128xbf16> to vector<128x128xbf16>
    %16 = vector.extract_strided_slice %13 {offsets = [1, 0, 0], sizes = [8, 16, 128], strides = [1, 1, 1]} : vector<10x16x128xbf16> to vector<8x16x128xbf16>
    %17 = vector.shape_cast %16 : vector<8x16x128xbf16> to vector<128x128xbf16>
    %18 = vector.extract_strided_slice %13 {offsets = [2, 0, 0], sizes = [8, 16, 128], strides = [1, 1, 1]} : vector<10x16x128xbf16> to vector<8x16x128xbf16>
    %19 = vector.shape_cast %18 : vector<8x16x128xbf16> to vector<128x128xbf16>
    %c0_4 = arith.constant 0 : index
    %20 = arith.index_cast %1 : i32 to index
    %c2 = arith.constant 2 : index
    %c0_5 = arith.constant 0 : index
    %21 = vector.load %arg2[%c0_4, %20, %c2, %c0_5] : memref<1x18x18x128xbf16, #tpu.memory_space<vmem>>, vector<1x10x16x128xbf16>
    %22 = vector.shape_cast %21 : vector<1x10x16x128xbf16> to vector<10x16x128xbf16>
    %23 = vector.extract_strided_slice %22 {offsets = [0, 0, 0], sizes = [8, 16, 128], strides = [1, 1, 1]} : vector<10x16x128xbf16> to vector<8x16x128xbf16>
    %24 = vector.shape_cast %23 : vector<8x16x128xbf16> to vector<128x128xbf16>
    %25 = vector.extract_strided_slice %22 {offsets = [1, 0, 0], sizes = [8, 16, 128], strides = [1, 1, 1]} : vector<10x16x128xbf16> to vector<8x16x128xbf16>
    %26 = vector.shape_cast %25 : vector<8x16x128xbf16> to vector<128x128xbf16>
    %27 = vector.extract_strided_slice %22 {offsets = [2, 0, 0], sizes = [8, 16, 128], strides = [1, 1, 1]} : vector<10x16x128xbf16> to vector<8x16x128xbf16>
    %28 = vector.shape_cast %27 : vector<8x16x128xbf16> to vector<128x128xbf16>
    %29 = tpu.concatenate %6, %8, %10, %15, %17, %19, %24, %26, %28 in 1 : vector<128x128xbf16>, vector<128x128xbf16>, vector<128x128xbf16>, vector<128x128xbf16>, vector<128x128xbf16>, vector<128x128xbf16>, vector<128x128xbf16>, vector<128x128xbf16>, vector<128x128xbf16> -> vector<128x1152xbf16>
    %c0_6 = arith.constant 0 : index
    %c0_7 = arith.constant 0 : index
    %30 = vector.load %arg3[%c0_6, %c0_7] : memref<1152x128xbf16, #tpu.memory_space<vmem>>, vector<1152x128xbf16>
    %cst = arith.constant dense<0.000000e+00> : vector<128x128xf32>
    %31 = tpu.matmul %29, %30, %cst {dimension_numbers = #tpu.dot_dimension_numbers<[1], [0], [0], [1], [0, 0, 1, 1], [], []>} : vector<128x1152xbf16>, vector<1152x128xbf16>, vector<128x128xf32> -> vector<128x128xf32>
    %c0_8 = arith.constant 0 : index
    %c0_9 = arith.constant 0 : index
    %32 = vector.load %arg4[%c0_8, %c0_9] : memref<1x128xf32, #tpu.memory_space<vmem>>, vector<1x128xf32>
    %33 = vector.shape_cast %32 : vector<1x128xf32> to vector<128xf32>
    %34 = vector.shape_cast %33 : vector<128xf32> to vector<1x128xf32>
    %35 = vector.broadcast %34 : vector<1x128xf32> to vector<128x128xf32>
    %36 = arith.addf %31, %35 : vector<128x128xf32>
    %cst_10 = arith.constant 0.000000e+00 : f32
    %37 = vector.broadcast %cst_10 : f32 to vector<128x128xf32>
    %38 = arith.maximumf %36, %37 : vector<128x128xf32>
    %39 = vector.shape_cast %38 : vector<128x128xf32> to vector<8x16x128xf32>
    %c0_11 = arith.constant 0 : index
    %c0_12 = arith.constant 0 : index
    %c0_13 = arith.constant 0 : index
    %c0_14 = arith.constant 0 : index
    %40 = vector.load %arg5[%c0_11, %c0_12, %c0_13, %c0_14] : memref<1x8x16x128xf32, #tpu.memory_space<vmem>>, vector<1x8x16x128xf32>
    %41 = vector.shape_cast %40 : vector<1x8x16x128xf32> to vector<8x16x128xf32>
    %42 = vector.shape_cast %39 : vector<8x16x128xf32> to vector<1x8x16x128xf32>
    tpu.vector_store %arg5[%c0_11, %c0_12, %c0_13, %c0_14], %42 {strides = array<i32>} : memref<1x8x16x128xf32, #tpu.memory_space<vmem>>, vector<1x8x16x128xf32>,
    return
  }
  func.func @transform_0(%arg0: i32, %arg1: i32) -> (i32, i32, i32, i32) {
    %c0_i32 = arith.constant 0 : i32
    %c0_i32_0 = arith.constant 0 : i32
    %c0_i32_1 = arith.constant 0 : i32
    %c0_i32_2 = arith.constant 0 : i32
    return %arg0, %c0_i32, %c0_i32_0, %c0_i32_1 : i32, i32, i32, i32
  }
  func.func @transform_1(%arg0: i32, %arg1: i32) -> (i32, i32) {
    %c0_i32 = arith.constant 0 : i32
    %c0_i32_0 = arith.constant 0 : i32
    %c0_i32_1 = arith.constant 0 : i32
    return %c0_i32, %c0_i32_0 : i32, i32
  }
  func.func @transform_2(%arg0: i32, %arg1: i32) -> (i32, i32) {
    %c0_i32 = arith.constant 0 : i32
    %c0_i32_0 = arith.constant 0 : i32
    %c0_i32_1 = arith.constant 0 : i32
    return %c0_i32, %c0_i32_0 : i32, i32
  }
  func.func @transform_3(%arg0: i32, %arg1: i32) -> (i32, i32, i32, i32) {
    %c0_i32 = arith.constant 0 : i32
    %c0_i32_0 = arith.constant 0 : i32
    %c0_i32_1 = arith.constant 0 : i32
    return %arg0, %arg1, %c0_i32, %c0_i32_0 : i32, i32, i32, i32
  }
}

</mosaic_0001>

<llo_original>
// kernel: tpu_custom_call.1
$region0: #{tpu_custom_call.1}
  #allocation0 [shape = 'u32[]', space=smem, size = 0x4, offset = 0x4, fixed_abs, tag = 'smem constant byte address 0x4 - core index']
  #allocation1 [shape = 'u32[144,128]{1,0:T(1,128)}', space=vmem, size = 0x12000, scoped, tag = 'internal scratch']
  %s0 = inlined_call_operand.vmem [shape: bf16[2,18,18,128], index: 0, kind: input, shape index: {}]
  %s1 = inlined_call_operand.vmem [shape: bf16[1152,128], index: 1, kind: input, shape index: {}]
  %s2 = inlined_call_operand.vmem [shape: f32[1,128], index: 2, kind: input, shape index: {}]
  %s3 = inlined_call_operand.hbm [shape: f32[2,16,16,128], index: 3, kind: output, shape index: {}]
  %s4 = sld [smem:[#allocation0]]
  $region45: #{tpu_custom_call.1} parent=0
    _
  %s6 = ssub.s32 1, %s4
  %s7 = scalar_select 0, %s6, %s4
  $region1: #{tpu_custom_call.1} parent=0
    #allocation2 [shape = 'u8[131072]{0}', space=vmem, size = 0x20000, scoped, tag = 'output window, operand 0']
    #allocation3 [shape = 's32[2]{0}', space=sflag, size = 0x8, scoped, tag = 'scoped memory for tpu_custom_call.1']
    %8 = vsyncpa [#allocation3], 0
    %s9 = scalar_lea.sflag [#allocation3], 1
    %10 = vsyncpa %s9, 0
    loop: start=0, step=1, limit=6
    $region2: #{tpu_custom_call.1} parent=1 // loop_pre_header
      _
    $region3: #{tpu_custom_call.1} parent=1 // loop_header
      %s12 = sphi 0, %s16
      %p13 = scmp.ge.s32.totalorder %s12, 6
      %s19 = sphi 0, %s31
      %s20 = sphi 0, %s27
      %s21 = sphi 0, %s19
      %s22 = sphi 0, %s20
      %s23 = sphi 0, %s21
      %s24 = sphi 0, %s22
      %s34 = sphi 0, %s36
      %s37 = sphi 0, %s34
      %s38 = sphi 0, %s37
      %s54 = sphi 0, %s38
      %s58 = sphi 0, %s58
      %s60 = sphi 0, %s58
      %s61 = sphi 0, %s60
      %s75 = sphi 0, %s61
      %s79 = sphi 0, %s79
      %s81 = sphi 0, %s79
      %s82 = sphi 0, %s81
      %s96 = sphi 0, %s82
      %s104 = sphi 0, %s106
      %s107 = sphi 0, %s104
      %s108 = sphi 0, %s107
      %s124 = sphi 0, %s108
    $region4: #{tpu_custom_call.1} parent=1 // loop_header_branch
      %15 = sbr.rel (%p13) target = $region8
    $region5: #{tpu_custom_call.1} parent=1 // loop_body
      %s17 = ssub.s32 %s12, 1
      %s18 = ssub.s32 %s12, 2
      %s25 = sadd.s32 1, %s20
      %p26 = scmp.ge.s32.totalorder %s25, 2
      %s27 = scalar_select %p26, 0, %s25
      %s28 = sadd.s32 1, %s19
      %s29 = scalar_select %p26, %s28, %s19
      %p30 = scmp.ge.s32.totalorder %s29, 2
      %s31 = scalar_select %p30, 0, %s29
      %s32 = ssub.s32 %s19, %s31
      %p33 = scmp.eq.s32.totalorder %s32, 0
      %s35 = sadd.s32 %s34, 1
      %s36 = scalar_select %p33, %s34, %s35
      %p39 = pneg %p33
      %p40 = scmp.eq.s32.totalorder %s12, 3
      %p41 = por %p39, %p40
      %p42 = scmp.ne.s32.totalorder %s34, %s37
      %p43 = scmp.eq.s32.totalorder %s12, 0
      %p44 = por %p42, %p43
      %p45 = scmp.ne.s32.totalorder %s34, %s37
      %p46 = scmp.eq.s32.totalorder %s17, 3
      %p47 = por %p45, %p46
      %p48 = scmp.ne.s32.totalorder %s37, %s38
      %p49 = scmp.eq.s32.totalorder %s17, 0
      %p50 = por %p48, %p49
      %p51 = scmp.ne.s32.totalorder %s37, %s38
      %p52 = scmp.eq.s32.totalorder %s18, 3
      %p53 = por %p51, %p52
      %p55 = scmp.ne.s32.totalorder %s38, %s54
      %p56 = scmp.eq.s32.totalorder %s18, 0
      %p57 = por %p55, %p56
      %s59 = sadd.s32 %s58, 1
      %p62 = scmp.eq.s32.totalorder %s12, 3
      %p63 = scmp.ne.s32.totalorder %s58, %s60
      %p64 = scmp.eq.s32.totalorder %s12, 0
      %p65 = por %p63, %p64
      %p66 = scmp.ne.s32.totalorder %s58, %s60
      %p67 = scmp.eq.s32.totalorder %s17, 3
      %p68 = por %p66, %p67
      %p69 = scmp.ne.s32.totalorder %s60, %s61
      %p70 = scmp.eq.s32.totalorder %s17, 0
      %p71 = por %p69, %p70
      %p72 = scmp.ne.s32.totalorder %s60, %s61
      %p73 = scmp.eq.s32.totalorder %s18, 3
      %p74 = por %p72, %p73
      %p76 = scmp.ne.s32.totalorder %s61, %s75
      %p77 = scmp.eq.s32.totalorder %s18, 0
      %p78 = por %p76, %p77
      %s80 = sadd.s32 %s79, 1
      %p83 = scmp.eq.s32.totalorder %s12, 3
      %p84 = scmp.ne.s32.totalorder %s79, %s81
      %p85 = scmp.eq.s32.totalorder %s12, 0
      %p86 = por %p84, %p85
      %p87 = scmp.ne.s32.totalorder %s79, %s81
      %p88 = scmp.eq.s32.totalorder %s17, 3
      %p89 = por %p87, %p88
      %p90 = scmp.ne.s32.totalorder %s81, %s82
      %p91 = scmp.eq.s32.totalorder %s17, 0
      %p92 = por %p90, %p91
      %p93 = scmp.ne.s32.totalorder %s81, %s82
      %p94 = scmp.eq.s32.totalorder %s18, 3
      %p95 = por %p93, %p94
      %p97 = scmp.ne.s32.totalorder %s82, %s96
      %p98 = scmp.eq.s32.totalorder %s18, 0
      %p99 = por %p97, %p98
      %s100 = ssub.s32 %s19, %s31
      %s101 = ssub.s32 %s20, %s27
      %s102 = sor.u32 %s100, %s101
      %p103 = scmp.eq.s32.totalorder %s102, 0
      %s105 = sadd.s32 %s104, 1
      %s106 = scalar_select %p103, %s104, %s105
      %p109 = pneg %p103
      %p110 = scmp.eq.s32.totalorder %s12, 3
      %p111 = por %p109, %p110
      %p112 = scmp.ne.s32.totalorder %s104, %s107
      %p113 = scmp.eq.s32.totalorder %s12, 0
      %p114 = por %p112, %p113
      %p115 = scmp.ne.s32.totalorder %s104, %s107
      %p116 = scmp.eq.s32.totalorder %s17, 3
      %p117 = por %p115, %p116
      %p118 = scmp.ne.s32.totalorder %s107, %s108
      %p119 = scmp.eq.s32.totalorder %s17, 0
      %p120 = por %p118, %p119
      %p121 = scmp.ne.s32.totalorder %s107, %s108
      %p122 = scmp.eq.s32.totalorder %s18, 3
      %p123 = por %p121, %p122
      %p125 = scmp.ne.s32.totalorder %s108, %s124
      %p126 = scmp.eq.s32.totalorder %s18, 0
      %p127 = por %p125, %p126
      %p128 = scmp.le.s32.totalorder 1, %s12
      %p129 = scmp.lt.s32.totalorder %s12, 5
      %p130 = pnand %p128, %p129
      %p131 = pneg %p130
      // Predicated region
      $region9: #{tpu_custom_call.1} parent=5 // pred_check
        _
      $region10: #{tpu_custom_call.1} parent=5 // pred_check_branch
        %133 = sbr.rel (%p130) target = $region12
      $region11: #{tpu_custom_call.1} parent=5 // pred_region
        %s134 = ssub.s32 %s12, 1
        // Predicated region
        $region13: #{tpu_custom_call.1} parent=11 // pred_check
          %p135 = pneg %p71
        $region14: #{tpu_custom_call.1} parent=11 // pred_check_branch
          %137 = sbr.rel (%p135) target = $region16
        $region15: #{tpu_custom_call.1} parent=11 // pred_region
          _
        $region16: #{tpu_custom_call.1} parent=11 // pred_fallthru
          _
        // Predicated region
        $region17: #{tpu_custom_call.1} parent=11 // pred_check
          %p138 = pneg %p92
        $region18: #{tpu_custom_call.1} parent=11 // pred_check_branch
          %140 = sbr.rel (%p138) target = $region20
        $region19: #{tpu_custom_call.1} parent=11 // pred_region
          _
        $region20: #{tpu_custom_call.1} parent=11 // pred_fallthru
          _
      $region12: #{tpu_custom_call.1} parent=5 // pred_fallthru
        _
      %p141 = scmp.lt.s32.totalorder %s12, 4
      // Predicated region
      $region21: #{tpu_custom_call.1} parent=5 // pred_check
        %p142 = pneg %p141
      $region22: #{tpu_custom_call.1} parent=5 // pred_check_branch
        %144 = sbr.rel (%p142) target = $region24
      $region23: #{tpu_custom_call.1} parent=5 // pred_region
        // Predicated region
        $region25: #{tpu_custom_call.1} parent=23 // pred_check
          %p145 = pneg %p44
        $region26: #{tpu_custom_call.1} parent=23 // pred_check_branch
          %147 = sbr.rel (%p145) target = $region28
        $region27: #{tpu_custom_call.1} parent=23 // pred_region
          %p148 = scmp.lt.s32.totalorder %s19, 1
          %s149 = scalar_select %p148, %s19, 1
          %s150 = smul.addr %s149, 54
          %s151 = smul.addr %s150, 4
          %s152 = scalar_lea.vmem %s0, %s151
        $region28: #{tpu_custom_call.1} parent=23 // pred_fallthru
          _
      $region24: #{tpu_custom_call.1} parent=5 // pred_fallthru
        _
      %p153 = scmp.le.s32.totalorder 1, %s12
      %p154 = scmp.lt.s32.totalorder %s12, 5
      %p155 = pnand %p153, %p154
      %p156 = pneg %p155
      // Predicated region
      $region29: #{tpu_custom_call.1} parent=5 // pred_check
        _
      $region30: #{tpu_custom_call.1} parent=5 // pred_check_branch
        %158 = sbr.rel (%p155) target = $region32
      $region31: #{tpu_custom_call.1} parent=5 // pred_region
        %s159 = ssub.s32 %s12, 1
        %p160 = scmp.lt.s32.totalorder %s21, 1
        %s161 = scalar_select %p160, %s21, 1
        %s162 = smul.addr %s161, 54
        %s163 = smul.addr %s162, 4
        %s164 = scalar_lea.vmem %s0, %s163
        %p165 = pneg %p50
        %p166 = pneg %p47
        %p167 = pneg %p71
        %p168 = pneg %p68
        %p169 = pneg %p92
        %p170 = pneg %p89
        %p171 = pneg %p120
        %p172 = pneg %p117
        %s173 = sand.u32 %s107, 1
        %s174 = scalar_lea.sflag [#allocation3], %s173
        %s175 = sand.u32 %s107, 1
        %s176 = smul.addr %s175, 128
        %s177 = scalar_lea.vmem [#allocation2], %s176
        %p178 = scmp.lt.s32.totalorder %s21, 1
        %s179 = scalar_select %p178, %s21, 1
        %s180 = smul.addr %s179, 54
        %s181 = smul.addr %s180, 4
        %s182 = scalar_lea.vmem %s0, %s181
        %s183 = smul.u32 8, %s22
        %s185 = smul.u32 %s22, 8
        %s186 = smul.u32 %s185, 3
        %s187 = smul.addr %s186, 4
        %s188 = scalar_lea.vmem %s182, %s187
        %v189 = vld [vmem:[%s188] sm:$0xf]
        %v190 = vld [vmem:[%s188 + $0x4] sm:$0xf]
        %v191 = vld [vmem:[%s188 + $0xc] sm:$0xf]
        %v192 = vld [vmem:[%s188 + $0x10] sm:$0xf]
        %v193 = vld [vmem:[%s188 + $0x18] sm:$0xf]
        %v194 = vld [vmem:[%s188 + $0x1c] sm:$0xf]
        %v195 = vld [vmem:[%s188 + $0x24] sm:$0xf]
        %v196 = vld [vmem:[%s188 + $0x28] sm:$0xf]
        %v197 = vld [vmem:[%s188 + $0x30] sm:$0xf]
        %v198 = vld [vmem:[%s188 + $0x34] sm:$0xf]
        %v199 = vld [vmem:[%s188 + $0x3c] sm:$0xf]
        %v200 = vld [vmem:[%s188 + $0x40] sm:$0xf]
        %v201 = vld [vmem:[%s188 + $0x48] sm:$0xf]
        %v202 = vld [vmem:[%s188 + $0x4c] sm:$0xf]
        %v203 = vld [vmem:[%s188 + $0x54] sm:$0xf]
        %v204 = vld [vmem:[%s188 + $0x58] sm:$0xf]
        %v205 = vld [vmem:[%s188 + $0x60] sm:$0xf]
        %v206 = vld [vmem:[%s188 + $0x64] sm:$0xf]
        %v207 = vld [vmem:[%s188 + $0x6c] sm:$0xf]
        %v208 = vld [vmem:[%s188 + $0x70] sm:$0xf]
        %v209 = vld [vmem:[%s188 + $0x8] sm:$0x1]
        %v210 = vld [vmem:[%s188 + $0x14] sm:$0x1]
        %v211 = vld [vmem:[%s188 + $0x20] sm:$0x1]
        %v212 = vld [vmem:[%s188 + $0x2c] sm:$0x1]
        %v213 = vld [vmem:[%s188 + $0x38] sm:$0x1]
        %v214 = vld [vmem:[%s188 + $0x44] sm:$0x1]
        %v215 = vld [vmem:[%s188 + $0x50] sm:$0x1]
        %v216 = vld [vmem:[%s188 + $0x5c] sm:$0x1]
        %v217 = vld [vmem:[%s188 + $0x68] sm:$0x1]
        %v218 = vld [vmem:[%s188 + $0x74] sm:$0x1]
        %vm219 = vsmask.f32 3328
        %vm220 = vsmask.f32 7440
        %vm221 = vmor %vm219, %vm220
        %v223 = vshrl.u32 %v189, 16
        %v225 = vrot.slane %v223, 4
        %v226 = vshll.u32 %v189, 16
        %v228 = vrot.slane %v226, 5
        %v229 = vor.u32 %v225, %v228
        %v230 = vrot.slane %v229, 4
        %v232 = vshll.u32 %v190, 16
        %v234 = vrot.slane %v232, 5
        %v235 = vsel %vm221, %v230, %v234
        %v236 = vshrl.u32 %v190, 16
        %v238 = vrot.slane %v236, 4
        %v239 = vor.u32 %v238, %v234
        %v240 = vrot.slane %v239, 4
        %v242 = vshll.u32 %v209, 16
        %v244 = vrot.slane %v242, 5
        %v245 = vsel %vm221, %v240, %v244
        %v247 = vshrl.u32 %v191, 16
        %v249 = vrot.slane %v247, 4
        %v250 = vshll.u32 %v191, 16
        %v252 = vrot.slane %v250, 5
        %v253 = vor.u32 %v249, %v252
        %v254 = vrot.slane %v253, 4
        %v256 = vshll.u32 %v192, 16
        %v258 = vrot.slane %v256, 5
        %v259 = vsel %vm221, %v254, %v258
        %v260 = vshrl.u32 %v192, 16
        %v262 = vrot.slane %v260, 4
        %v263 = vor.u32 %v262, %v258
        %v264 = vrot.slane %v263, 4
        %v266 = vshll.u32 %v210, 16
        %v268 = vrot.slane %v266, 5
        %v269 = vsel %vm221, %v264, %v268
        %v271 = vshrl.u32 %v193, 16
        %v273 = vrot.slane %v271, 4
        %v274 = vshll.u32 %v193, 16
        %v276 = vrot.slane %v274, 5
        %v277 = vor.u32 %v273, %v276
        %v278 = vrot.slane %v277, 4
        %v280 = vshll.u32 %v194, 16
        %v282 = vrot.slane %v280, 5
        %v283 = vsel %vm221, %v278, %v282
        %v284 = vshrl.u32 %v194, 16
        %v286 = vrot.slane %v284, 4
        %v287 = vor.u32 %v286, %v282
        %v288 = vrot.slane %v287, 4
        %v290 = vshll.u32 %v211, 16
        %v292 = vrot.slane %v290, 5
        %v293 = vsel %vm221, %v288, %v292
        %v295 = vshrl.u32 %v195, 16
        %v297 = vrot.slane %v295, 4
        %v298 = vshll.u32 %v195, 16
        %v300 = vrot.slane %v298, 5
        %v301 = vor.u32 %v297, %v300
        %v302 = vrot.slane %v301, 4
        %v304 = vshll.u32 %v196, 16
        %v306 = vrot.slane %v304, 5
        %v307 = vsel %vm221, %v302, %v306
        %v308 = vshrl.u32 %v196, 16
        %v310 = vrot.slane %v308, 4
        %v311 = vor.u32 %v310, %v306
        %v312 = vrot.slane %v311, 4
        %v314 = vshll.u32 %v212, 16
        %v316 = vrot.slane %v314, 5
        %v317 = vsel %vm221, %v312, %v316
        %v319 = vshrl.u32 %v197, 16
        %v321 = vrot.slane %v319, 4
        %v322 = vshll.u32 %v197, 16
        %v324 = vrot.slane %v322, 5
        %v325 = vor.u32 %v321, %v324
        %v326 = vrot.slane %v325, 4
        %v328 = vshll.u32 %v198, 16
        %v330 = vrot.slane %v328, 5
        %v331 = vsel %vm221, %v326, %v330
        %v332 = vshrl.u32 %v198, 16
        %v334 = vrot.slane %v332, 4
        %v335 = vor.u32 %v334, %v330
        %v336 = vrot.slane %v335, 4
        %v338 = vshll.u32 %v213, 16
        %v340 = vrot.slane %v338, 5
        %v341 = vsel %vm221, %v336, %v340
        %v343 = vshrl.u32 %v199, 16
        %v345 = vrot.slane %v343, 4
        %v346 = vshll.u32 %v199, 16
        %v348 = vrot.slane %v346, 5
        %v349 = vor.u32 %v345, %v348
        %v350 = vrot.slane %v349, 4
        %v352 = vshll.u32 %v200, 16
        %v354 = vrot.slane %v352, 5
        %v355 = vsel %vm221, %v350, %v354
        %v356 = vshrl.u32 %v200, 16
        %v358 = vrot.slane %v356, 4
        %v359 = vor.u32 %v358, %v354
        %v360 = vrot.slane %v359, 4
        %v362 = vshll.u32 %v214, 16
        %v364 = vrot.slane %v362, 5
        %v365 = vsel %vm221, %v360, %v364
        %v367 = vshrl.u32 %v201, 16
        %v369 = vrot.slane %v367, 4
        %v370 = vshll.u32 %v201, 16
        %v372 = vrot.slane %v370, 5
        %v373 = vor.u32 %v369, %v372
        %v374 = vrot.slane %v373, 4
        %v376 = vshll.u32 %v202, 16
        %v378 = vrot.slane %v376, 5
        %v379 = vsel %vm221, %v374, %v378
        %v380 = vshrl.u32 %v202, 16
        %v382 = vrot.slane %v380, 4
        %v383 = vor.u32 %v382, %v378
        %v384 = vrot.slane %v383, 4
        %v386 = vshll.u32 %v215, 16
        %v388 = vrot.slane %v386, 5
        %v389 = vsel %vm221, %v384, %v388
        %v391 = vshrl.u32 %v203, 16
        %v393 = vrot.slane %v391, 4
        %v394 = vshll.u32 %v203, 16
        %v396 = vrot.slane %v394, 5
        %v397 = vor.u32 %v393, %v396
        %v398 = vrot.slane %v397, 4
        %v400 = vshll.u32 %v204, 16
        %v402 = vrot.slane %v400, 5
        %v403 = vsel %vm221, %v398, %v402
        %v404 = vshrl.u32 %v204, 16
        %v406 = vrot.slane %v404, 4
        %v407 = vor.u32 %v406, %v402
        %v408 = vrot.slane %v407, 4
        %v410 = vshll.u32 %v216, 16
        %v412 = vrot.slane %v410, 5
        %v413 = vsel %vm221, %v408, %v412
        %v415 = vshrl.u32 %v205, 16
        %v417 = vrot.slane %v415, 4
        %v418 = vshll.u32 %v205, 16
        %v420 = vrot.slane %v418, 5
        %v421 = vor.u32 %v417, %v420
        %v422 = vrot.slane %v421, 4
        %v424 = vshll.u32 %v206, 16
        %v426 = vrot.slane %v424, 5
        %v427 = vsel %vm221, %v422, %v426
        %v428 = vshrl.u32 %v206, 16
        %v430 = vrot.slane %v428, 4
        %v431 = vor.u32 %v430, %v426
        %v432 = vrot.slane %v431, 4
        %v434 = vshll.u32 %v217, 16
        %v436 = vrot.slane %v434, 5
        %v437 = vsel %vm221, %v432, %v436
        %v439 = vshrl.u32 %v207, 16
        %v441 = vrot.slane %v439, 4
        %v442 = vshll.u32 %v207, 16
        %v444 = vrot.slane %v442, 5
        %v445 = vor.u32 %v441, %v444
        %v446 = vrot.slane %v445, 4
        %v448 = vshll.u32 %v208, 16
        %v450 = vrot.slane %v448, 5
        %v451 = vsel %vm221, %v446, %v450
        %v452 = vshrl.u32 %v208, 16
        %v454 = vrot.slane %v452, 4
        %v455 = vor.u32 %v454, %v450
        %v456 = vrot.slane %v455, 4
        %v458 = vshll.u32 %v218, 16
        %v460 = vrot.slane %v458, 5
        %v461 = vsel %vm221, %v456, %v460
        %v462 = vld [vmem:[%s188] sm:$0xe]
        %v463 = vld [vmem:[%s188 + $0xc] sm:$0xe]
        %v464 = vld [vmem:[%s188 + $0x18] sm:$0xe]
        %v465 = vld [vmem:[%s188 + $0x24] sm:$0xe]
        %v466 = vld [vmem:[%s188 + $0x30] sm:$0xe]
        %v467 = vld [vmem:[%s188 + $0x3c] sm:$0xe]
        %v468 = vld [vmem:[%s188 + $0x48] sm:$0xe]
        %v469 = vld [vmem:[%s188 + $0x54] sm:$0xe]
        %v470 = vld [vmem:[%s188 + $0x60] sm:$0xe]
        %v471 = vld [vmem:[%s188 + $0x6c] sm:$0xe]
        %vm496 = vcmask 1042432
        %vm497 = vcmask 1046532
        %vm498 = vmor %vm496, %vm497
        %v499 = vrot.slane %v462, 5
        %v500 = vrot.slane %v499, 4
        %v501 = vrot.slane %v190, 5
        %v502 = vsel %vm498, %v500, %v501
        %v503 = vrot.slane %v501, 4
        %v504 = vrot.slane %v209, 5
        %v505 = vsel %vm498, %v503, %v504
        %v506 = vrot.slane %v463, 5
        %v507 = vrot.slane %v506, 4
        %v508 = vrot.slane %v192, 5
        %v509 = vsel %vm498, %v507, %v508
        %v510 = vrot.slane %v508, 4
        %v511 = vrot.slane %v210, 5
        %v512 = vsel %vm498, %v510, %v511
        %v513 = vrot.slane %v464, 5
        %v514 = vrot.slane %v513, 4
        %v515 = vrot.slane %v194, 5
        %v516 = vsel %vm498, %v514, %v515
        %v517 = vrot.slane %v515, 4
        %v518 = vrot.slane %v211, 5
        %v519 = vsel %vm498, %v517, %v518
        %v520 = vrot.slane %v465, 5
        %v521 = vrot.slane %v520, 4
        %v522 = vrot.slane %v196, 5
        %v523 = vsel %vm498, %v521, %v522
        %v524 = vrot.slane %v522, 4
        %v525 = vrot.slane %v212, 5
        %v526 = vsel %vm498, %v524, %v525
        %v527 = vrot.slane %v466, 5
        %v528 = vrot.slane %v527, 4
        %v529 = vrot.slane %v198, 5
        %v530 = vsel %vm498, %v528, %v529
        %v531 = vrot.slane %v529, 4
        %v532 = vrot.slane %v213, 5
        %v533 = vsel %vm498, %v531, %v532
        %v534 = vrot.slane %v467, 5
        %v535 = vrot.slane %v534, 4
        %v536 = vrot.slane %v200, 5
        %v537 = vsel %vm498, %v535, %v536
        %v538 = vrot.slane %v536, 4
        %v539 = vrot.slane %v214, 5
        %v540 = vsel %vm498, %v538, %v539
        %v541 = vrot.slane %v468, 5
        %v542 = vrot.slane %v541, 4
        %v543 = vrot.slane %v202, 5
        %v544 = vsel %vm498, %v542, %v543
        %v545 = vrot.slane %v543, 4
        %v546 = vrot.slane %v215, 5
        %v547 = vsel %vm498, %v545, %v546
        %v548 = vrot.slane %v469, 5
        %v549 = vrot.slane %v548, 4
        %v550 = vrot.slane %v204, 5
        %v551 = vsel %vm498, %v549, %v550
        %v552 = vrot.slane %v550, 4
        %v553 = vrot.slane %v216, 5
        %v554 = vsel %vm498, %v552, %v553
        %v558 = vrot.slane %v470, 5
        %v559 = vrot.slane %v558, 4
        %v560 = vrot.slane %v206, 5
        %v561 = vsel %vm498, %v559, %v560
        %v562 = vrot.slane %v560, 4
        %v563 = vrot.slane %v217, 5
        %v564 = vsel %vm498, %v562, %v563
        %v568 = vrot.slane %v471, 5
        %v569 = vrot.slane %v568, 4
        %v570 = vrot.slane %v208, 5
        %v571 = vsel %vm498, %v569, %v570
        %v572 = vrot.slane %v570, 4
        %v573 = vrot.slane %v218, 5
        %v574 = vsel %vm498, %v572, %v573
        %v583 = vunpack.c.l.b16 %v189
        %v584 = vunpack.c.l.b16 %v190
        %v585 = vunpack.c.l.b16 %v191
        %v586 = vunpack.c.l.b16 %v192
        %v587 = vunpack.c.l.b16 %v193
        %v588 = vunpack.c.l.b16 %v194
        %v589 = vunpack.c.l.b16 %v195
        %v590 = vunpack.c.l.b16 %v196
        %v591 = vunpack.c.l.b16 %v197
        %v592 = vunpack.c.l.b16 %v198
        %v593 = vunpack.c.l.b16 %v199
        %v594 = vunpack.c.l.b16 %v200
        %v595 = vunpack.c.l.b16 %v201
        %v596 = vunpack.c.l.b16 %v202
        %v597 = vunpack.c.l.b16 %v203
        %v598 = vunpack.c.l.b16 %v204
        %v599 = vpack.c.b16 %v584, %v583
        %v600 = vpack.c.b16 %v586, %v585
        %v601 = vpack.c.b16 %v588, %v587
        %v602 = vpack.c.b16 %v590, %v589
        %v603 = vpack.c.b16 %v592, %v591
        %v604 = vpack.c.b16 %v594, %v593
        %v605 = vpack.c.b16 %v596, %v595
        %v606 = vpack.c.b16 %v598, %v597
        %v616 = vunpack.c.l.b16 %v205
        %v617 = vunpack.c.l.b16 %v206
        %v618 = vpack.c.b16 %v617, %v616
        %v621 = vunpack.c.l.b16 %v207
        %v622 = vunpack.c.l.b16 %v208
        %v623 = vpack.c.b16 %v622, %v621
        %v625 = vunpack.c.l.b16 %v235
        %v626 = vunpack.c.l.b16 %v245
        %v627 = vunpack.c.l.b16 %v259
        %v628 = vunpack.c.l.b16 %v269
        %v629 = vunpack.c.l.b16 %v283
        %v630 = vunpack.c.l.b16 %v293
        %v631 = vunpack.c.l.b16 %v307
        %v632 = vunpack.c.l.b16 %v317
        %v633 = vunpack.c.l.b16 %v331
        %v634 = vunpack.c.l.b16 %v341
        %v635 = vunpack.c.l.b16 %v355
        %v636 = vunpack.c.l.b16 %v365
        %v637 = vunpack.c.l.b16 %v379
        %v638 = vunpack.c.l.b16 %v389
        %v639 = vunpack.c.l.b16 %v403
        %v640 = vunpack.c.l.b16 %v413
        %v641 = vpack.c.b16 %v626, %v625
        %v642 = vpack.c.b16 %v628, %v627
        %v643 = vpack.c.b16 %v630, %v629
        %v644 = vpack.c.b16 %v632, %v631
        %v645 = vpack.c.b16 %v634, %v633
        %v646 = vpack.c.b16 %v636, %v635
        %v647 = vpack.c.b16 %v638, %v637
        %v648 = vpack.c.b16 %v640, %v639
        %v657 = vunpack.c.l.b16 %v427
        %v658 = vunpack.c.l.b16 %v437
        %v659 = vpack.c.b16 %v658, %v657
        %v661 = vunpack.c.l.b16 %v451
        %v662 = vunpack.c.l.b16 %v461
        %v663 = vpack.c.b16 %v662, %v661
        %v665 = vunpack.c.l.b16 %v502
        %v666 = vunpack.c.l.b16 %v505
        %v667 = vunpack.c.l.b16 %v509
        %v668 = vunpack.c.l.b16 %v512
        %v669 = vunpack.c.l.b16 %v516
        %v670 = vunpack.c.l.b16 %v519
        %v671 = vunpack.c.l.b16 %v523
        %v672 = vunpack.c.l.b16 %v526
        %v673 = vunpack.c.l.b16 %v530
        %v674 = vunpack.c.l.b16 %v533
        %v675 = vunpack.c.l.b16 %v537
        %v676 = vunpack.c.l.b16 %v540
        %v677 = vunpack.c.l.b16 %v544
        %v678 = vunpack.c.l.b16 %v547
        %v679 = vunpack.c.l.b16 %v551
        %v680 = vunpack.c.l.b16 %v554
        %v681 = vpack.c.b16 %v666, %v665
        %v682 = vpack.c.b16 %v668, %v667
        %v683 = vpack.c.b16 %v670, %v669
        %v684 = vpack.c.b16 %v672, %v671
        %v685 = vpack.c.b16 %v674, %v673
        %v686 = vpack.c.b16 %v676, %v675
        %v687 = vpack.c.b16 %v678, %v677
        %v688 = vpack.c.b16 %v680, %v679
        %v697 = vunpack.c.l.b16 %v561
        %v698 = vunpack.c.l.b16 %v564
        %v699 = vpack.c.b16 %v698, %v697
        %v701 = vunpack.c.l.b16 %v571
        %v702 = vunpack.c.l.b16 %v574
        %v703 = vpack.c.b16 %v702, %v701
        %v705 = vld [vmem:[%s1] sm:$0xf]
        %v706 = vld [vmem:[%s1 + $0x4] sm:$0xf]
        %v707 = vld [vmem:[%s1 + $0x8] sm:$0xf]
        %v708 = vld [vmem:[%s1 + $0xc] sm:$0xf]
        %v709 = vld [vmem:[%s1 + $0x10] sm:$0xf]
        %v710 = vld [vmem:[%s1 + $0x14] sm:$0xf]
        %v711 = vld [vmem:[%s1 + $0x18] sm:$0xf]
        %v712 = vld [vmem:[%s1 + $0x1c] sm:$0xf]
        %v713 = vld [vmem:[%s1 + $0x20] sm:$0xf]
        %v714 = vld [vmem:[%s1 + $0x24] sm:$0xf]
        %v715 = vld [vmem:[%s1 + $0x28] sm:$0xf]
        %v716 = vld [vmem:[%s1 + $0x2c] sm:$0xf]
        %v717 = vld [vmem:[%s1 + $0x30] sm:$0xf]
        %v718 = vld [vmem:[%s1 + $0x34] sm:$0xf]
        %v719 = vld [vmem:[%s1 + $0x38] sm:$0xf]
        %v720 = vld [vmem:[%s1 + $0x3c] sm:$0xf]
        %v721 = vld [vmem:[%s1 + $0x40] sm:$0xf]
        %v722 = vld [vmem:[%s1 + $0x44] sm:$0xf]
        %v723 = vld [vmem:[%s1 + $0x48] sm:$0xf]
        %v724 = vld [vmem:[%s1 + $0x4c] sm:$0xf]
        %v725 = vld [vmem:[%s1 + $0x50] sm:$0xf]
        %v726 = vld [vmem:[%s1 + $0x54] sm:$0xf]
        %v727 = vld [vmem:[%s1 + $0x58] sm:$0xf]
        %v728 = vld [vmem:[%s1 + $0x5c] sm:$0xf]
        %v729 = vld [vmem:[%s1 + $0x60] sm:$0xf]
        %v730 = vld [vmem:[%s1 + $0x64] sm:$0xf]
        %v731 = vld [vmem:[%s1 + $0x68] sm:$0xf]
        %v732 = vld [vmem:[%s1 + $0x6c] sm:$0xf]
        %v733 = vld [vmem:[%s1 + $0x70] sm:$0xf]
        %v734 = vld [vmem:[%s1 + $0x74] sm:$0xf]
        %v735 = vld [vmem:[%s1 + $0x78] sm:$0xf]
        %v736 = vld [vmem:[%s1 + $0x7c] sm:$0xf]
        %v737 = vld [vmem:[%s1 + $0x80] sm:$0xf]
        %v738 = vld [vmem:[%s1 + $0x84] sm:$0xf]
        %v739 = vld [vmem:[%s1 + $0x88] sm:$0xf]
        %v740 = vld [vmem:[%s1 + $0x8c] sm:$0xf]
        %v741 = vld [vmem:[%s1 + $0x90] sm:$0xf]
        %v742 = vld [vmem:[%s1 + $0x94] sm:$0xf]
        %v743 = vld [vmem:[%s1 + $0x98] sm:$0xf]
        %v744 = vld [vmem:[%s1 + $0x9c] sm:$0xf]
        %v745 = vld [vmem:[%s1 + $0xa0] sm:$0xf]
        %v746 = vld [vmem:[%s1 + $0xa4] sm:$0xf]
        %v747 = vld [vmem:[%s1 + $0xa8] sm:$0xf]
        %v748 = vld [vmem:[%s1 + $0xac] sm:$0xf]
        %v749 = vld [vmem:[%s1 + $0xb0] sm:$0xf]
        %v750 = vld [vmem:[%s1 + $0xb4] sm:$0xf]
        %v751 = vld [vmem:[%s1 + $0xb8] sm:$0xf]
        %v752 = vld [vmem:[%s1 + $0xbc] sm:$0xf]
        %v753 = vld [vmem:[%s1 + $0xc0] sm:$0xf]
        %v754 = vld [vmem:[%s1 + $0xc4] sm:$0xf]
        %v755 = vld [vmem:[%s1 + $0xc8] sm:$0xf]
        %v756 = vld [vmem:[%s1 + $0xcc] sm:$0xf]
        %v757 = vld [vmem:[%s1 + $0xd0] sm:$0xf]
        %v758 = vld [vmem:[%s1 + $0xd4] sm:$0xf]
        %v759 = vld [vmem:[%s1 + $0xd8] sm:$0xf]
        %v760 = vld [vmem:[%s1 + $0xdc] sm:$0xf]
        %v761 = vld [vmem:[%s1 + $0xe0] sm:$0xf]
        %v762 = vld [vmem:[%s1 + $0xe4] sm:$0xf]
        %v763 = vld [vmem:[%s1 + $0xe8] sm:$0xf]
        %v764 = vld [vmem:[%s1 + $0xec] sm:$0xf]
        %v765 = vld [vmem:[%s1 + $0xf0] sm:$0xf]
        %v766 = vld [vmem:[%s1 + $0xf4] sm:$0xf]
        %v767 = vld [vmem:[%s1 + $0xf8] sm:$0xf]
        %v768 = vld [vmem:[%s1 + $0xfc] sm:$0xf]
        %v769 = vld [vmem:[%s1 + $0x100] sm:$0xf]
        %v770 = vld [vmem:[%s1 + $0x104] sm:$0xf]
        %v771 = vld [vmem:[%s1 + $0x108] sm:$0xf]
        %v772 = vld [vmem:[%s1 + $0x10c] sm:$0xf]
        %v773 = vld [vmem:[%s1 + $0x110] sm:$0xf]
        %v774 = vld [vmem:[%s1 + $0x114] sm:$0xf]
        %v775 = vld [vmem:[%s1 + $0x118] sm:$0xf]
        %v776 = vld [vmem:[%s1 + $0x11c] sm:$0xf]
        %v777 = vld [vmem:[%s1 + $0x120] sm:$0xf]
        %v778 = vld [vmem:[%s1 + $0x124] sm:$0xf]
        %v779 = vld [vmem:[%s1 + $0x128] sm:$0xf]
        %v780 = vld [vmem:[%s1 + $0x12c] sm:$0xf]
        %v781 = vld [vmem:[%s1 + $0x130] sm:$0xf]
        %v782 = vld [vmem:[%s1 + $0x134] sm:$0xf]
        %v783 = vld [vmem:[%s1 + $0x138] sm:$0xf]
        %v784 = vld [vmem:[%s1 + $0x13c] sm:$0xf]
        %v785 = vld [vmem:[%s1 + $0x140] sm:$0xf]
        %v786 = vld [vmem:[%s1 + $0x144] sm:$0xf]
        %v787 = vld [vmem:[%s1 + $0x148] sm:$0xf]
        %v788 = vld [vmem:[%s1 + $0x14c] sm:$0xf]
        %v789 = vld [vmem:[%s1 + $0x150] sm:$0xf]
        %v790 = vld [vmem:[%s1 + $0x154] sm:$0xf]
        %v791 = vld [vmem:[%s1 + $0x158] sm:$0xf]
        %v792 = vld [vmem:[%s1 + $0x15c] sm:$0xf]
        %v793 = vld [vmem:[%s1 + $0x160] sm:$0xf]
        %v794 = vld [vmem:[%s1 + $0x164] sm:$0xf]
        %v795 = vld [vmem:[%s1 + $0x168] sm:$0xf]
        %v796 = vld [vmem:[%s1 + $0x16c] sm:$0xf]
        %v797 = vld [vmem:[%s1 + $0x170] sm:$0xf]
        %v798 = vld [vmem:[%s1 + $0x174] sm:$0xf]
        %v799 = vld [vmem:[%s1 + $0x178] sm:$0xf]
        %v800 = vld [vmem:[%s1 + $0x17c] sm:$0xf]
        %v801 = vld [vmem:[%s1 + $0x180] sm:$0xf]
        %v802 = vld [vmem:[%s1 + $0x184] sm:$0xf]
        %v803 = vld [vmem:[%s1 + $0x188] sm:$0xf]
        %v804 = vld [vmem:[%s1 + $0x18c] sm:$0xf]
        %v805 = vld [vmem:[%s1 + $0x190] sm:$0xf]
        %v806 = vld [vmem:[%s1 + $0x194] sm:$0xf]
        %v807 = vld [vmem:[%s1 + $0x198] sm:$0xf]
        %v808 = vld [vmem:[%s1 + $0x19c] sm:$0xf]
        %v809 = vld [vmem:[%s1 + $0x1a0] sm:$0xf]
        %v810 = vld [vmem:[%s1 + $0x1a4] sm:$0xf]
        %v811 = vld [vmem:[%s1 + $0x1a8] sm:$0xf]
        %v812 = vld [vmem:[%s1 + $0x1ac] sm:$0xf]
        %v813 = vld [vmem:[%s1 + $0x1b0] sm:$0xf]
        %v814 = vld [vmem:[%s1 + $0x1b4] sm:$0xf]
        %v815 = vld [vmem:[%s1 + $0x1b8] sm:$0xf]
        %v816 = vld [vmem:[%s1 + $0x1bc] sm:$0xf]
        %v817 = vld [vmem:[%s1 + $0x1c0] sm:$0xf]
        %v818 = vld [vmem:[%s1 + $0x1c4] sm:$0xf]
        %v819 = vld [vmem:[%s1 + $0x1c8] sm:$0xf]
        %v820 = vld [vmem:[%s1 + $0x1cc] sm:$0xf]
        %v821 = vld [vmem:[%s1 + $0x1d0] sm:$0xf]
        %v822 = vld [vmem:[%s1 + $0x1d4] sm:$0xf]
        %v823 = vld [vmem:[%s1 + $0x1d8] sm:$0xf]
        %v824 = vld [vmem:[%s1 + $0x1dc] sm:$0xf]
        %v825 = vld [vmem:[%s1 + $0x1e0] sm:$0xf]
        %v826 = vld [vmem:[%s1 + $0x1e4] sm:$0xf]
        %v827 = vld [vmem:[%s1 + $0x1e8] sm:$0xf]
        %v828 = vld [vmem:[%s1 + $0x1ec] sm:$0xf]
        %v829 = vld [vmem:[%s1 + $0x1f0] sm:$0xf]
        %v830 = vld [vmem:[%s1 + $0x1f4] sm:$0xf]
        %v831 = vld [vmem:[%s1 + $0x1f8] sm:$0xf]
        %v832 = vld [vmem:[%s1 + $0x1fc] sm:$0xf]
        %v833 = vld [vmem:[%s1 + $0x200] sm:$0xf]
        %v834 = vld [vmem:[%s1 + $0x204] sm:$0xf]
        %v835 = vld [vmem:[%s1 + $0x208] sm:$0xf]
        %v836 = vld [vmem:[%s1 + $0x20c] sm:$0xf]
        %v837 = vld [vmem:[%s1 + $0x210] sm:$0xf]
        %v838 = vld [vmem:[%s1 + $0x214] sm:$0xf]
        %v839 = vld [vmem:[%s1 + $0x218] sm:$0xf]
        %v840 = vld [vmem:[%s1 + $0x21c] sm:$0xf]
        %v841 = vld [vmem:[%s1 + $0x220] sm:$0xf]
        %v842 = vld [vmem:[%s1 + $0x224] sm:$0xf]
        %v843 = vld [vmem:[%s1 + $0x228] sm:$0xf]
        %v844 = vld [vmem:[%s1 + $0x22c] sm:$0xf]
        %v845 = vld [vmem:[%s1 + $0x230] sm:$0xf]
        %v846 = vld [vmem:[%s1 + $0x234] sm:$0xf]
        %v847 = vld [vmem:[%s1 + $0x238] sm:$0xf]
        %v848 = vld [vmem:[%s1 + $0x23c] sm:$0xf]
        %v849 = vld [vmem:[%s2] sm:$0x1]
        %v851 = vlaneseq
        %v852 = vshrl.u32 %v851, 7
        %v853 = vsub.s32 0, %v852
        %v854 = vrot.slane %v849, %v853
        %v1000 = vunpack.c.l.b16 %v705
        %v1001 = vunpack.c.l.b16 %v706
        %v1002 = vunpack.c.l.b16 %v707
        %v1003 = vunpack.c.l.b16 %v708
        %v1004 = vunpack.c.l.b16 %v709
        %v1005 = vunpack.c.l.b16 %v710
        %v1006 = vunpack.c.l.b16 %v711
        %v1007 = vunpack.c.l.b16 %v712
        %v1008 = vunpack.c.l.b16 %v713
        %v1009 = vunpack.c.l.b16 %v714
        %v1010 = vunpack.c.l.b16 %v715
        %v1011 = vunpack.c.l.b16 %v716
        %v1012 = vunpack.c.l.b16 %v717
        %v1013 = vunpack.c.l.b16 %v718
        %v1014 = vunpack.c.l.b16 %v719
        %v1015 = vunpack.c.l.b16 %v720
        %v1016 = vunpack.c.l.b16 %v721
        %v1017 = vunpack.c.l.b16 %v722
        %v1018 = vunpack.c.l.b16 %v723
        %v1019 = vunpack.c.l.b16 %v724
        %v1020 = vunpack.c.l.b16 %v725
        %v1021 = vunpack.c.l.b16 %v726
        %v1022 = vunpack.c.l.b16 %v727
        %v1023 = vunpack.c.l.b16 %v728
        %v1024 = vunpack.c.l.b16 %v729
        %v1025 = vunpack.c.l.b16 %v730
        %v1026 = vunpack.c.l.b16 %v731
        %v1027 = vunpack.c.l.b16 %v732
        %v1028 = vunpack.c.l.b16 %v733
        %v1029 = vunpack.c.l.b16 %v734
        %v1030 = vunpack.c.l.b16 %v735
        %v1031 = vunpack.c.l.b16 %v736
        %v1032 = vunpack.c.l.b16 %v737
        %v1033 = vunpack.c.l.b16 %v738
        %v1034 = vunpack.c.l.b16 %v739
        %v1035 = vunpack.c.l.b16 %v740
        %v1036 = vunpack.c.l.b16 %v741
        %v1037 = vunpack.c.l.b16 %v742
        %v1038 = vunpack.c.l.b16 %v743
        %v1039 = vunpack.c.l.b16 %v744
        %v1040 = vunpack.c.l.b16 %v745
        %v1041 = vunpack.c.l.b16 %v746
        %v1042 = vunpack.c.l.b16 %v747
        %v1043 = vunpack.c.l.b16 %v748
        %v1044 = vunpack.c.l.b16 %v749
        %v1045 = vunpack.c.l.b16 %v750
        %v1046 = vunpack.c.l.b16 %v751
        %v1047 = vunpack.c.l.b16 %v752
        %v1048 = vunpack.c.l.b16 %v753
        %v1049 = vunpack.c.l.b16 %v754
        %v1050 = vunpack.c.l.b16 %v755
        %v1051 = vunpack.c.l.b16 %v756
        %v1052 = vunpack.c.l.b16 %v757
        %v1053 = vunpack.c.l.b16 %v758
        %v1054 = vunpack.c.l.b16 %v759
        %v1055 = vunpack.c.l.b16 %v760
        %v1056 = vunpack.c.l.b16 %v761
        %v1057 = vunpack.c.l.b16 %v762
        %v1058 = vunpack.c.l.b16 %v763
        %v1059 = vunpack.c.l.b16 %v764
        %v1060 = vunpack.c.l.b16 %v765
        %v1061 = vunpack.c.l.b16 %v766
        %v1062 = vunpack.c.l.b16 %v767
        %v1063 = vunpack.c.l.b16 %v768
        %v1064 = vunpack.c.l.b16 %v769
        %v1065 = vunpack.c.l.b16 %v770
        %v1066 = vunpack.c.l.b16 %v771
        %v1067 = vunpack.c.l.b16 %v772
        %v1068 = vunpack.c.l.b16 %v773
        %v1069 = vunpack.c.l.b16 %v774
        %v1070 = vunpack.c.l.b16 %v775
        %v1071 = vunpack.c.l.b16 %v776
        %v1072 = vunpack.c.l.b16 %v777
        %v1073 = vunpack.c.l.b16 %v778
        %v1074 = vunpack.c.l.b16 %v779
        %v1075 = vunpack.c.l.b16 %v780
        %v1076 = vunpack.c.l.b16 %v781
        %v1077 = vunpack.c.l.b16 %v782
        %v1078 = vunpack.c.l.b16 %v783
        %v1079 = vunpack.c.l.b16 %v784
        %v1080 = vunpack.c.l.b16 %v785
        %v1081 = vunpack.c.l.b16 %v786
        %v1082 = vunpack.c.l.b16 %v787
        %v1083 = vunpack.c.l.b16 %v788
        %v1084 = vunpack.c.l.b16 %v789
        %v1085 = vunpack.c.l.b16 %v790
        %v1086 = vunpack.c.l.b16 %v791
        %v1087 = vunpack.c.l.b16 %v792
        %v1088 = vunpack.c.l.b16 %v793
        %v1089 = vunpack.c.l.b16 %v794
        %v1090 = vunpack.c.l.b16 %v795
        %v1091 = vunpack.c.l.b16 %v796
        %v1092 = vunpack.c.l.b16 %v797
        %v1093 = vunpack.c.l.b16 %v798
        %v1094 = vunpack.c.l.b16 %v799
        %v1095 = vunpack.c.l.b16 %v800
        %v1096 = vunpack.c.l.b16 %v801
        %v1097 = vunpack.c.l.b16 %v802
        %v1098 = vunpack.c.l.b16 %v803
        %v1099 = vunpack.c.l.b16 %v804
        %v1100 = vunpack.c.l.b16 %v805
        %v1101 = vunpack.c.l.b16 %v806
        %v1102 = vunpack.c.l.b16 %v807
        %v1103 = vunpack.c.l.b16 %v808
        %v1104 = vunpack.c.l.b16 %v809
        %v1105 = vunpack.c.l.b16 %v810
        %v1106 = vunpack.c.l.b16 %v811
        %v1107 = vunpack.c.l.b16 %v812
        %v1108 = vunpack.c.l.b16 %v813
        %v1109 = vunpack.c.l.b16 %v814
        %v1110 = vunpack.c.l.b16 %v815
        %v1111 = vunpack.c.l.b16 %v816
        %v1112 = vunpack.c.l.b16 %v817
        %v1113 = vunpack.c.l.b16 %v818
        %v1114 = vunpack.c.l.b16 %v819
        %v1115 = vunpack.c.l.b16 %v820
        %v1116 = vunpack.c.l.b16 %v821
        %v1117 = vunpack.c.l.b16 %v822
        %v1118 = vunpack.c.l.b16 %v823
        %v1119 = vunpack.c.l.b16 %v824
        %v1120 = vunpack.c.l.b16 %v825
        %v1121 = vunpack.c.l.b16 %v826
        %v1122 = vunpack.c.l.b16 %v827
        %v1123 = vunpack.c.l.b16 %v828
        %v1124 = vunpack.c.l.b16 %v829
        %v1125 = vunpack.c.l.b16 %v830
        %v1126 = vunpack.c.l.b16 %v831
        %v1127 = vunpack.c.l.b16 %v832
        %v1128 = vunpack.c.l.b16 %v833
        %v1129 = vunpack.c.l.b16 %v834
        %v1130 = vunpack.c.l.b16 %v835
        %v1131 = vunpack.c.l.b16 %v836
        %v1132 = vunpack.c.l.b16 %v837
        %v1133 = vunpack.c.l.b16 %v838
        %v1134 = vunpack.c.l.b16 %v839
        %v1135 = vunpack.c.l.b16 %v840
        %v1136 = vunpack.c.l.b16 %v841
        %v1137 = vunpack.c.l.b16 %v842
        %v1138 = vunpack.c.l.b16 %v843
        %v1139 = vunpack.c.l.b16 %v844
        %v1140 = vunpack.c.l.b16 %v845
        %v1141 = vunpack.c.l.b16 %v846
        %v1142 = vunpack.c.l.b16 %v847
        %v1143 = vunpack.c.l.b16 %v848
        %v1144 = vpack.c.b16 %v1001, %v1000
        %v1145 = vpack.c.b16 %v1003, %v1002
        %v1146 = vpack.c.b16 %v1005, %v1004
        %v1147 = vpack.c.b16 %v1007, %v1006
        %v1148 = vpack.c.b16 %v1009, %v1008
        %v1149 = vpack.c.b16 %v1011, %v1010
        %v1150 = vpack.c.b16 %v1013, %v1012
        %v1151 = vpack.c.b16 %v1015, %v1014
        %v1152 = vpack.c.b16 %v1017, %v1016
        %v1153 = vpack.c.b16 %v1019, %v1018
        %v1154 = vpack.c.b16 %v1021, %v1020
        %v1155 = vpack.c.b16 %v1023, %v1022
        %v1156 = vpack.c.b16 %v1025, %v1024
        %v1157 = vpack.c.b16 %v1027, %v1026
        %v1158 = vpack.c.b16 %v1029, %v1028
        %v1159 = vpack.c.b16 %v1031, %v1030
        %v1160 = vpack.c.b16 %v1033, %v1032
        %v1161 = vpack.c.b16 %v1035, %v1034
        %v1162 = vpack.c.b16 %v1037, %v1036
        %v1163 = vpack.c.b16 %v1039, %v1038
        %v1164 = vpack.c.b16 %v1041, %v1040
        %v1165 = vpack.c.b16 %v1043, %v1042
        %v1166 = vpack.c.b16 %v1045, %v1044
        %v1167 = vpack.c.b16 %v1047, %v1046
        %v1168 = vpack.c.b16 %v1049, %v1048
        %v1169 = vpack.c.b16 %v1051, %v1050
        %v1170 = vpack.c.b16 %v1053, %v1052
        %v1171 = vpack.c.b16 %v1055, %v1054
        %v1172 = vpack.c.b16 %v1057, %v1056
        %v1173 = vpack.c.b16 %v1059, %v1058
        %v1174 = vpack.c.b16 %v1061, %v1060
        %v1175 = vpack.c.b16 %v1063, %v1062
        %v1176 = vpack.c.b16 %v1065, %v1064
        %v1177 = vpack.c.b16 %v1067, %v1066
        %v1178 = vpack.c.b16 %v1069, %v1068
        %v1179 = vpack.c.b16 %v1071, %v1070
        %v1180 = vpack.c.b16 %v1073, %v1072
        %v1181 = vpack.c.b16 %v1075, %v1074
        %v1182 = vpack.c.b16 %v1077, %v1076
        %v1183 = vpack.c.b16 %v1079, %v1078
        %v1184 = vpack.c.b16 %v1081, %v1080
        %v1185 = vpack.c.b16 %v1083, %v1082
        %v1186 = vpack.c.b16 %v1085, %v1084
        %v1187 = vpack.c.b16 %v1087, %v1086
        %v1188 = vpack.c.b16 %v1089, %v1088
        %v1189 = vpack.c.b16 %v1091, %v1090
        %v1190 = vpack.c.b16 %v1093, %v1092
        %v1191 = vpack.c.b16 %v1095, %v1094
        %v1192 = vpack.c.b16 %v1097, %v1096
        %v1193 = vpack.c.b16 %v1099, %v1098
        %v1194 = vpack.c.b16 %v1101, %v1100
        %v1195 = vpack.c.b16 %v1103, %v1102
        %v1196 = vpack.c.b16 %v1105, %v1104
        %v1197 = vpack.c.b16 %v1107, %v1106
        %v1198 = vpack.c.b16 %v1109, %v1108
        %v1199 = vpack.c.b16 %v1111, %v1110
        %v1200 = vpack.c.b16 %v1113, %v1112
        %v1201 = vpack.c.b16 %v1115, %v1114
        %v1202 = vpack.c.b16 %v1117, %v1116
        %v1203 = vpack.c.b16 %v1119, %v1118
        %v1204 = vpack.c.b16 %v1121, %v1120
        %v1205 = vpack.c.b16 %v1123, %v1122
        %v1206 = vpack.c.b16 %v1125, %v1124
        %v1207 = vpack.c.b16 %v1127, %v1126
        %v1208 = vpack.c.b16 %v1129, %v1128
        %v1209 = vpack.c.b16 %v1131, %v1130
        %v1210 = vpack.c.b16 %v1133, %v1132
        %v1211 = vpack.c.b16 %v1135, %v1134
        %v1212 = vpack.c.b16 %v1137, %v1136
        %v1213 = vpack.c.b16 %v1139, %v1138
        %v1214 = vpack.c.b16 %v1141, %v1140
        %v1215 = vpack.c.b16 %v1143, %v1142
        %1288 = vmatprep.subr.bf16.mxu0 0
        %1289 = vmatpush1.bf16.msra.mxu0 %v1151
        %1290 = vmatprep.subr.bf16.mxu0 0
        %1291 = vmatpush1.bf16.msra.mxu0 %v1150
        %1292 = vmatprep.subr.bf16.mxu0 0
        %1293 = vmatpush1.bf16.msra.mxu0 %v1149
        %1294 = vmatprep.subr.bf16.mxu0 0
        %1295 = vmatpush1.bf16.msra.mxu0 %v1148
        %1296 = vmatprep.subr.bf16.mxu0 0
        %1297 = vmatpush1.bf16.msra.mxu0 %v1147
        %1298 = vmatprep.subr.bf16.mxu0 0
        %1299 = vmatpush1.bf16.msra.mxu0 %v1146
        %1300 = vmatprep.subr.bf16.mxu0 0
        %1301 = vmatpush1.bf16.msra.mxu0 %v1145
        %1302 = vmatprep.subr.bf16.mxu0 0
        %1303 = vmatpush1.bf16.msra.mxu0 %v1144
        %1304 = vmatprep.subr.bf16.mxu0 0
        %1305 = vmatpush2.bf16.msra.mxu0 %v1159
        %1306 = vmatprep.subr.bf16.mxu0 0
        %1307 = vmatpush2.bf16.msra.mxu0 %v1158
        %1308 = vmatprep.subr.bf16.mxu0 0
        %1309 = vmatpush2.bf16.msra.mxu0 %v1157
        %1310 = vmatprep.subr.bf16.mxu0 0
        %1311 = vmatpush2.bf16.msra.mxu0 %v1156
        %1312 = vmatprep.subr.bf16.mxu0 0
        %1313 = vmatpush2.bf16.msra.mxu0 %v1155
        %1314 = vmatprep.subr.bf16.mxu0 0
        %1315 = vmatpush2.bf16.msra.mxu0 %v1154
        %1316 = vmatprep.subr.bf16.mxu0 0
        %1317 = vmatpush2.bf16.msra.mxu0 %v1153
        %1318 = vmatprep.subr.bf16.mxu0 0
        %1319 = vmatpush2.bf16.msra.mxu0 %v1152
        %1320 = vmatprep.mubr.bf16.mxu0 %v600
        %1321 = vmatmul.mubr.bf16.gmra.mxu0 %v599
        %v1322 = vpop.f32.mrf.mxu0
        %v1323 = vadd.f32 %v854, %v1322
        %v1324 = vpop.f32.mrf.mxu0
        %v1325 = vpop.f32.mrf.mxu0
        %v1326 = vadd.f32 %v854, %v1325
        %v1327 = vpop.f32.mrf.mxu0
        %1328 = vmatprep.mubr.bf16.mxu0 %v601
        %1329 = vmatmul.mubr.bf16.gmra.mxu0 %v600
        %v1330 = vpop.f32.mrf.mxu0
        %v1331 = vadd.f32 %v854, %v1330
        %v1332 = vpop.f32.mrf.mxu0
        %v1333 = vpop.f32.mrf.mxu0
        %v1334 = vadd.f32 %v854, %v1333
        %v1335 = vpop.f32.mrf.mxu0
        %1336 = vmatprep.mubr.bf16.mxu0 %v602
        %1337 = vmatmul.mubr.bf16.gmra.mxu0 %v601
        %v1338 = vpop.f32.mrf.mxu0
        %v1339 = vadd.f32 %v854, %v1338
        %v1340 = vpop.f32.mrf.mxu0
        %v1341 = vpop.f32.mrf.mxu0
        %v1342 = vadd.f32 %v854, %v1341
        %v1343 = vpop.f32.mrf.mxu0
        %1344 = vmatprep.mubr.bf16.mxu0 %v603
        %1345 = vmatmul.mubr.bf16.gmra.mxu0 %v602
        %v1346 = vpop.f32.mrf.mxu0
        %v1347 = vadd.f32 %v854, %v1346
        %v1348 = vpop.f32.mrf.mxu0
        %v1349 = vpop.f32.mrf.mxu0
        %v1350 = vadd.f32 %v854, %v1349
        %v1351 = vpop.f32.mrf.mxu0
        %1352 = vmatprep.mubr.bf16.mxu0 %v604
        %1353 = vmatmul.mubr.bf16.gmra.mxu0 %v603
        %v1354 = vpop.f32.mrf.mxu0
        %v1355 = vadd.f32 %v854, %v1354
        %v1356 = vpop.f32.mrf.mxu0
        %v1357 = vpop.f32.mrf.mxu0
        %v1358 = vadd.f32 %v854, %v1357
        %v1359 = vpop.f32.mrf.mxu0
        %1360 = vmatprep.mubr.bf16.mxu0 %v605
        %1361 = vmatmul.mubr.bf16.gmra.mxu0 %v604
        %v1362 = vpop.f32.mrf.mxu0
        %v1363 = vadd.f32 %v854, %v1362
        %v1364 = vpop.f32.mrf.mxu0
        %v1365 = vpop.f32.mrf.mxu0
        %v1366 = vadd.f32 %v854, %v1365
        %v1367 = vpop.f32.mrf.mxu0
        %1368 = vmatprep.mubr.bf16.mxu0 %v606
        %1369 = vmatmul.mubr.bf16.gmra.mxu0 %v605
        %v1370 = vpop.f32.mrf.mxu0
        %v1371 = vadd.f32 %v854, %v1370
        %v1372 = vpop.f32.mrf.mxu0
        %v1373 = vpop.f32.mrf.mxu0
        %v1374 = vadd.f32 %v854, %v1373
        %v1375 = vpop.f32.mrf.mxu0
        %1376 = vmatprep.mubr.bf16.mxu0 %v618
        %1377 = vmatmul.mubr.bf16.gmra.mxu0 %v606
        %v1378 = vpop.f32.mrf.mxu0
        %v1379 = vadd.f32 %v854, %v1378
        %v1380 = vpop.f32.mrf.mxu0
        %v1381 = vpop.f32.mrf.mxu0
        %v1382 = vadd.f32 %v854, %v1381
        %v1383 = vpop.f32.mrf.mxu0
        %1384 = vdwg.mxu0
        %1385 = vmatprep.subr.bf16.mxu0 0
        %1386 = vmatpush1.bf16.msra.mxu0 %v1167
        %1387 = vmatprep.subr.bf16.mxu0 0
        %1388 = vmatpush1.bf16.msra.mxu0 %v1166
        %1389 = vmatprep.subr.bf16.mxu0 0
        %1390 = vmatpush1.bf16.msra.mxu0 %v1165
        %1391 = vmatprep.subr.bf16.mxu0 0
        %1392 = vmatpush1.bf16.msra.mxu0 %v1164
        %1393 = vmatprep.subr.bf16.mxu0 0
        %1394 = vmatpush1.bf16.msra.mxu0 %v1163
        %1395 = vmatprep.subr.bf16.mxu0 0
        %1396 = vmatpush1.bf16.msra.mxu0 %v1162
        %1397 = vmatprep.subr.bf16.mxu0 0
        %1398 = vmatpush1.bf16.msra.mxu0 %v1161
        %1399 = vmatprep.subr.bf16.mxu0 0
        %1400 = vmatpush1.bf16.msra.mxu0 %v1160
        %1401 = vmatprep.subr.bf16.mxu0 0
        %1402 = vmatpush2.bf16.msra.mxu0 %v1175
        %1403 = vmatprep.subr.bf16.mxu0 0
        %1404 = vmatpush2.bf16.msra.mxu0 %v1174
        %1405 = vmatprep.subr.bf16.mxu0 0
        %1406 = vmatpush2.bf16.msra.mxu0 %v1173
        %1407 = vmatprep.subr.bf16.mxu0 0
        %1408 = vmatpush2.bf16.msra.mxu0 %v1172
        %1409 = vmatprep.subr.bf16.mxu0 0
        %1410 = vmatpush2.bf16.msra.mxu0 %v1171
        %1411 = vmatprep.subr.bf16.mxu0 0
        %1412 = vmatpush2.bf16.msra.mxu0 %v1170
        %1413 = vmatprep.subr.bf16.mxu0 0
        %1414 = vmatpush2.bf16.msra.mxu0 %v1169
        %1415 = vmatprep.subr.bf16.mxu0 0
        %1416 = vmatpush2.bf16.msra.mxu0 %v1168
        %1417 = vmatprep.mubr.bf16.mxu0 %v641
        %1418 = vmatmul.mubr.bf16.gmra.mxu0 %v601
        %v1419 = vpop.f32.mrf.mxu0
        %v1420 = vadd.f32 %v1323, %v1419
        %v1421 = vpop.f32.mrf.mxu0
        %v1422 = vpop.f32.mrf.mxu0
        %v1423 = vadd.f32 %v1326, %v1422
        %v1424 = vpop.f32.mrf.mxu0
        %1425 = vmatprep.mubr.bf16.mxu0 %v642
        %1426 = vmatmul.mubr.bf16.gmra.mxu0 %v602
        %v1427 = vpop.f32.mrf.mxu0
        %v1428 = vadd.f32 %v1331, %v1427
        %v1429 = vpop.f32.mrf.mxu0
        %v1430 = vpop.f32.mrf.mxu0
        %v1431 = vadd.f32 %v1334, %v1430
        %v1432 = vpop.f32.mrf.mxu0
        %1433 = vmatprep.mubr.bf16.mxu0 %v643
        %1434 = vmatmul.mubr.bf16.gmra.mxu0 %v603
        %v1435 = vpop.f32.mrf.mxu0
        %v1436 = vadd.f32 %v1339, %v1435
        %v1437 = vpop.f32.mrf.mxu0
        %v1438 = vpop.f32.mrf.mxu0
        %v1439 = vadd.f32 %v1342, %v1438
        %v1440 = vpop.f32.mrf.mxu0
        %1441 = vmatprep.mubr.bf16.mxu0 %v644
        %1442 = vmatmul.mubr.bf16.gmra.mxu0 %v604
        %v1443 = vpop.f32.mrf.mxu0
        %v1444 = vadd.f32 %v1347, %v1443
        %v1445 = vpop.f32.mrf.mxu0
        %v1446 = vpop.f32.mrf.mxu0
        %v1447 = vadd.f32 %v1350, %v1446
        %v1448 = vpop.f32.mrf.mxu0
        %1449 = vmatprep.mubr.bf16.mxu0 %v645
        %1450 = vmatmul.mubr.bf16.gmra.mxu0 %v605
        %v1451 = vpop.f32.mrf.mxu0
        %v1452 = vadd.f32 %v1355, %v1451
        %v1453 = vpop.f32.mrf.mxu0
        %v1454 = vpop.f32.mrf.mxu0
        %v1455 = vadd.f32 %v1358, %v1454
        %v1456 = vpop.f32.mrf.mxu0
        %1457 = vmatprep.mubr.bf16.mxu0 %v646
        %1458 = vmatmul.mubr.bf16.gmra.mxu0 %v606
        %v1459 = vpop.f32.mrf.mxu0
        %v1460 = vadd.f32 %v1363, %v1459
        %v1461 = vpop.f32.mrf.mxu0
        %v1462 = vpop.f32.mrf.mxu0
        %v1463 = vadd.f32 %v1366, %v1462
        %v1464 = vpop.f32.mrf.mxu0
        %1465 = vmatprep.mubr.bf16.mxu0 %v647
        %1466 = vmatmul.mubr.bf16.gmra.mxu0 %v618
        %v1467 = vpop.f32.mrf.mxu0
        %v1468 = vadd.f32 %v1371, %v1467
        %v1469 = vpop.f32.mrf.mxu0
        %v1470 = vpop.f32.mrf.mxu0
        %v1471 = vadd.f32 %v1374, %v1470
        %v1472 = vpop.f32.mrf.mxu0
        %1473 = vmatprep.mubr.bf16.mxu0 %v648
        %1474 = vmatmul.mubr.bf16.gmra.mxu0 %v623
        %v1475 = vpop.f32.mrf.mxu0
        %v1476 = vadd.f32 %v1379, %v1475
        %v1477 = vpop.f32.mrf.mxu0
        %v1478 = vpop.f32.mrf.mxu0
        %v1479 = vadd.f32 %v1382, %v1478
        %v1480 = vpop.f32.mrf.mxu0
        %1481 = vdwg.mxu0
        %1482 = vmatprep.subr.bf16.mxu0 0
        %1483 = vmatpush1.bf16.msra.mxu0 %v1183
        %1484 = vmatprep.subr.bf16.mxu0 0
        %1485 = vmatpush1.bf16.msra.mxu0 %v1182
        %1486 = vmatprep.subr.bf16.mxu0 0
        %1487 = vmatpush1.bf16.msra.mxu0 %v1181
        %1488 = vmatprep.subr.bf16.mxu0 0
        %1489 = vmatpush1.bf16.msra.mxu0 %v1180
        %1490 = vmatprep.subr.bf16.mxu0 0
        %1491 = vmatpush1.bf16.msra.mxu0 %v1179
        %1492 = vmatprep.subr.bf16.mxu0 0
        %1493 = vmatpush1.bf16.msra.mxu0 %v1178
        %1494 = vmatprep.subr.bf16.mxu0 0
        %1495 = vmatpush1.bf16.msra.mxu0 %v1177
        %1496 = vmatprep.subr.bf16.mxu0 0
        %1497 = vmatpush1.bf16.msra.mxu0 %v1176
        %1498 = vmatprep.subr.bf16.mxu0 0
        %1499 = vmatpush2.bf16.msra.mxu0 %v1191
        %1500 = vmatprep.subr.bf16.mxu0 0
        %1501 = vmatpush2.bf16.msra.mxu0 %v1190
        %1502 = vmatprep.subr.bf16.mxu0 0
        %1503 = vmatpush2.bf16.msra.mxu0 %v1189
        %1504 = vmatprep.subr.bf16.mxu0 0
        %1505 = vmatpush2.bf16.msra.mxu0 %v1188
        %1506 = vmatprep.subr.bf16.mxu0 0
        %1507 = vmatpush2.bf16.msra.mxu0 %v1187
        %1508 = vmatprep.subr.bf16.mxu0 0
        %1509 = vmatpush2.bf16.msra.mxu0 %v1186
        %1510 = vmatprep.subr.bf16.mxu0 0
        %1511 = vmatpush2.bf16.msra.mxu0 %v1185
        %1512 = vmatprep.subr.bf16.mxu0 0
        %1513 = vmatpush2.bf16.msra.mxu0 %v1184
        %1514 = vmatprep.mubr.bf16.mxu0 %v643
        %1515 = vmatmul.mubr.bf16.gmra.mxu0 %v642
        %v1516 = vpop.f32.mrf.mxu0
        %v1517 = vadd.f32 %v1420, %v1516
        %v1518 = vpop.f32.mrf.mxu0
        %v1519 = vpop.f32.mrf.mxu0
        %v1520 = vadd.f32 %v1423, %v1519
        %v1521 = vpop.f32.mrf.mxu0
        %1522 = vmatprep.mubr.bf16.mxu0 %v644
        %1523 = vmatmul.mubr.bf16.gmra.mxu0 %v643
        %v1524 = vpop.f32.mrf.mxu0
        %v1525 = vadd.f32 %v1428, %v1524
        %v1526 = vpop.f32.mrf.mxu0
        %v1527 = vpop.f32.mrf.mxu0
        %v1528 = vadd.f32 %v1431, %v1527
        %v1529 = vpop.f32.mrf.mxu0
        %1530 = vmatprep.mubr.bf16.mxu0 %v645
        %1531 = vmatmul.mubr.bf16.gmra.mxu0 %v644
        %v1532 = vpop.f32.mrf.mxu0
        %v1533 = vadd.f32 %v1436, %v1532
        %v1534 = vpop.f32.mrf.mxu0
        %v1535 = vpop.f32.mrf.mxu0
        %v1536 = vadd.f32 %v1439, %v1535
        %v1537 = vpop.f32.mrf.mxu0
        %1538 = vmatprep.mubr.bf16.mxu0 %v646
        %1539 = vmatmul.mubr.bf16.gmra.mxu0 %v645
        %v1540 = vpop.f32.mrf.mxu0
        %v1541 = vadd.f32 %v1444, %v1540
        %v1542 = vpop.f32.mrf.mxu0
        %v1543 = vpop.f32.mrf.mxu0
        %v1544 = vadd.f32 %v1447, %v1543
        %v1545 = vpop.f32.mrf.mxu0
        %1546 = vmatprep.mubr.bf16.mxu0 %v647
        %1547 = vmatmul.mubr.bf16.gmra.mxu0 %v646
        %v1548 = vpop.f32.mrf.mxu0
        %v1549 = vadd.f32 %v1452, %v1548
        %v1550 = vpop.f32.mrf.mxu0
        %v1551 = vpop.f32.mrf.mxu0
        %v1552 = vadd.f32 %v1455, %v1551
        %v1553 = vpop.f32.mrf.mxu0
        %1554 = vmatprep.mubr.bf16.mxu0 %v648
        %1555 = vmatmul.mubr.bf16.gmra.mxu0 %v647
        %v1556 = vpop.f32.mrf.mxu0
        %v1557 = vadd.f32 %v1460, %v1556
        %v1558 = vpop.f32.mrf.mxu0
        %v1559 = vpop.f32.mrf.mxu0
        %v1560 = vadd.f32 %v1463, %v1559
        %v1561 = vpop.f32.mrf.mxu0
        %1562 = vmatprep.mubr.bf16.mxu0 %v659
        %1563 = vmatmul.mubr.bf16.gmra.mxu0 %v648
        %v1564 = vpop.f32.mrf.mxu0
        %v1565 = vadd.f32 %v1468, %v1564
        %v1566 = vpop.f32.mrf.mxu0
        %v1567 = vpop.f32.mrf.mxu0
        %v1568 = vadd.f32 %v1471, %v1567
        %v1569 = vpop.f32.mrf.mxu0
        %1570 = vmatprep.mubr.bf16.mxu0 %v663
        %1571 = vmatmul.mubr.bf16.gmra.mxu0 %v659
        %v1572 = vpop.f32.mrf.mxu0
        %v1573 = vadd.f32 %v1476, %v1572
        %v1574 = vpop.f32.mrf.mxu0
        %v1575 = vpop.f32.mrf.mxu0
        %v1576 = vadd.f32 %v1479, %v1575
        %v1577 = vpop.f32.mrf.mxu0
        %1578 = vdwg.mxu0
        %1579 = vmatprep.subr.bf16.mxu0 0
        %1580 = vmatpush1.bf16.msra.mxu0 %v1199
        %1581 = vmatprep.subr.bf16.mxu0 0
        %1582 = vmatpush1.bf16.msra.mxu0 %v1198
        %1583 = vmatprep.subr.bf16.mxu0 0
        %1584 = vmatpush1.bf16.msra.mxu0 %v1197
        %1585 = vmatprep.subr.bf16.mxu0 0
        %1586 = vmatpush1.bf16.msra.mxu0 %v1196
        %1587 = vmatprep.subr.bf16.mxu0 0
        %1588 = vmatpush1.bf16.msra.mxu0 %v1195
        %1589 = vmatprep.subr.bf16.mxu0 0
        %1590 = vmatpush1.bf16.msra.mxu0 %v1194
        %1591 = vmatprep.subr.bf16.mxu0 0
        %1592 = vmatpush1.bf16.msra.mxu0 %v1193
        %1593 = vmatprep.subr.bf16.mxu0 0
        %1594 = vmatpush1.bf16.msra.mxu0 %v1192
        %1595 = vmatprep.subr.bf16.mxu0 0
        %1596 = vmatpush2.bf16.msra.mxu0 %v1207
        %1597 = vmatprep.subr.bf16.mxu0 0
        %1598 = vmatpush2.bf16.msra.mxu0 %v1206
        %1599 = vmatprep.subr.bf16.mxu0 0
        %1600 = vmatpush2.bf16.msra.mxu0 %v1205
        %1601 = vmatprep.subr.bf16.mxu0 0
        %1602 = vmatpush2.bf16.msra.mxu0 %v1204
        %1603 = vmatprep.subr.bf16.mxu0 0
        %1604 = vmatpush2.bf16.msra.mxu0 %v1203
        %1605 = vmatprep.subr.bf16.mxu0 0
        %1606 = vmatpush2.bf16.msra.mxu0 %v1202
        %1607 = vmatprep.subr.bf16.mxu0 0
        %1608 = vmatpush2.bf16.msra.mxu0 %v1201
        %1609 = vmatprep.subr.bf16.mxu0 0
        %1610 = vmatpush2.bf16.msra.mxu0 %v1200
        %1611 = vmatprep.mubr.bf16.mxu0 %v682
        %1612 = vmatmul.mubr.bf16.gmra.mxu0 %v681
        %v1613 = vpop.f32.mrf.mxu0
        %v1614 = vadd.f32 %v1517, %v1613
        %v1615 = vpop.f32.mrf.mxu0
        %v1616 = vpop.f32.mrf.mxu0
        %v1617 = vadd.f32 %v1520, %v1616
        %v1618 = vpop.f32.mrf.mxu0
        %1619 = vmatprep.mubr.bf16.mxu0 %v683
        %1620 = vmatmul.mubr.bf16.gmra.mxu0 %v682
        %v1621 = vpop.f32.mrf.mxu0
        %v1622 = vadd.f32 %v1525, %v1621
        %v1623 = vpop.f32.mrf.mxu0
        %v1624 = vpop.f32.mrf.mxu0
        %v1625 = vadd.f32 %v1528, %v1624
        %v1626 = vpop.f32.mrf.mxu0
        %1627 = vmatprep.mubr.bf16.mxu0 %v684
        %1628 = vmatmul.mubr.bf16.gmra.mxu0 %v683
        %v1629 = vpop.f32.mrf.mxu0
        %v1630 = vadd.f32 %v1533, %v1629
        %v1631 = vpop.f32.mrf.mxu0
        %v1632 = vpop.f32.mrf.mxu0
        %v1633 = vadd.f32 %v1536, %v1632
        %v1634 = vpop.f32.mrf.mxu0
        %1635 = vmatprep.mubr.bf16.mxu0 %v685
        %1636 = vmatmul.mubr.bf16.gmra.mxu0 %v684
        %v1637 = vpop.f32.mrf.mxu0
        %v1638 = vadd.f32 %v1541, %v1637
        %v1639 = vpop.f32.mrf.mxu0
        %v1640 = vpop.f32.mrf.mxu0
        %v1641 = vadd.f32 %v1544, %v1640
        %v1642 = vpop.f32.mrf.mxu0
        %1643 = vmatprep.mubr.bf16.mxu0 %v686
        %1644 = vmatmul.mubr.bf16.gmra.mxu0 %v685
        %v1645 = vpop.f32.mrf.mxu0
        %v1646 = vadd.f32 %v1549, %v1645
        %v1647 = vpop.f32.mrf.mxu0
        %v1648 = vpop.f32.mrf.mxu0
        %v1649 = vadd.f32 %v1552, %v1648
        %v1650 = vpop.f32.mrf.mxu0
        %1651 = vmatprep.mubr.bf16.mxu0 %v687
        %1652 = vmatmul.mubr.bf16.gmra.mxu0 %v686
        %v1653 = vpop.f32.mrf.mxu0
        %v1654 = vadd.f32 %v1557, %v1653
        %v1655 = vpop.f32.mrf.mxu0
        %v1656 = vpop.f32.mrf.mxu0
        %v1657 = vadd.f32 %v1560, %v1656
        %v1658 = vpop.f32.mrf.mxu0
        %1659 = vmatprep.mubr.bf16.mxu0 %v688
        %1660 = vmatmul.mubr.bf16.gmra.mxu0 %v687
        %v1661 = vpop.f32.mrf.mxu0
        %v1662 = vadd.f32 %v1565, %v1661
        %v1663 = vpop.f32.mrf.mxu0
        %v1664 = vpop.f32.mrf.mxu0
        %v1665 = vadd.f32 %v1568, %v1664
        %v1666 = vpop.f32.mrf.mxu0
        %1667 = vmatprep.mubr.bf16.mxu0 %v699
        %1668 = vmatmul.mubr.bf16.gmra.mxu0 %v688
        %v1669 = vpop.f32.mrf.mxu0
        %v1670 = vadd.f32 %v1573, %v1669
        %v1671 = vpop.f32.mrf.mxu0
        %v1672 = vpop.f32.mrf.mxu0
        %v1673 = vadd.f32 %v1576, %v1672
        %v1674 = vpop.f32.mrf.mxu0
        %1675 = vdwg.mxu0
        %1676 = vmatprep.subr.bf16.mxu0 0
        %1677 = vmatpush1.bf16.msra.mxu0 %v1215
        %1678 = vmatprep.subr.bf16.mxu0 0
        %1679 = vmatpush1.bf16.msra.mxu0 %v1214
        %1680 = vmatprep.subr.bf16.mxu0 0
        %1681 = vmatpush1.bf16.msra.mxu0 %v1213
        %1682 = vmatprep.subr.bf16.mxu0 0
        %1683 = vmatpush1.bf16.msra.mxu0 %v1212
        %1684 = vmatprep.subr.bf16.mxu0 0
        %1685 = vmatpush1.bf16.msra.mxu0 %v1211
        %1686 = vmatprep.subr.bf16.mxu0 0
        %1687 = vmatpush1.bf16.msra.mxu0 %v1210
        %1688 = vmatprep.subr.bf16.mxu0 0
        %1689 = vmatpush1.bf16.msra.mxu0 %v1209
        %1690 = vmatprep.subr.bf16.mxu0 0
        %1691 = vmatpush1.bf16.msra.mxu0 %v1208
        %1692 = vmatprep.subr.bf16.mxu0 0
        %1693 = vmatpush2.bf16.msra.mxu0 0
        %1694 = vmatprep.subr.bf16.mxu0 0
        %1695 = vmatpush2.bf16.msra.mxu0 0
        %1696 = vmatprep.subr.bf16.mxu0 0
        %1697 = vmatpush2.bf16.msra.mxu0 0
        %1698 = vmatprep.subr.bf16.mxu0 0
        %1699 = vmatpush2.bf16.msra.mxu0 0
        %1700 = vmatprep.subr.bf16.mxu0 0
        %1701 = vmatpush2.bf16.msra.mxu0 0
        %1702 = vmatprep.subr.bf16.mxu0 0
        %1703 = vmatpush2.bf16.msra.mxu0 0
        %1704 = vmatprep.subr.bf16.mxu0 0
        %1705 = vmatpush2.bf16.msra.mxu0 0
        %1706 = vmatprep.subr.bf16.mxu0 0
        %1707 = vmatpush2.bf16.msra.mxu0 0
        %1708 = vmatprep.mubr.bf16.mxu0 0
        %1709 = vmatmul.mubr.bf16.gmra.mxu0 %v683
        %v1710 = vpop.f32.mrf.mxu0
        %v1711 = vadd.f32 %v1614, %v1710
        %v1712 = vpop.f32.mrf.mxu0
        %v1713 = vpop.f32.mrf.mxu0
        %v1714 = vadd.f32 %v1617, %v1713
        %v1715 = vpop.f32.mrf.mxu0
        %1716 = vmatprep.mubr.bf16.mxu0 0
        %1717 = vmatmul.mubr.bf16.gmra.mxu0 %v684
        %v1718 = vpop.f32.mrf.mxu0
        %v1719 = vadd.f32 %v1622, %v1718
        %v1720 = vpop.f32.mrf.mxu0
        %v1721 = vpop.f32.mrf.mxu0
        %v1722 = vadd.f32 %v1625, %v1721
        %v1723 = vpop.f32.mrf.mxu0
        %1724 = vmatprep.mubr.bf16.mxu0 0
        %1725 = vmatmul.mubr.bf16.gmra.mxu0 %v685
        %v1726 = vpop.f32.mrf.mxu0
        %v1727 = vadd.f32 %v1630, %v1726
        %v1728 = vpop.f32.mrf.mxu0
        %v1729 = vpop.f32.mrf.mxu0
        %v1730 = vadd.f32 %v1633, %v1729
        %v1731 = vpop.f32.mrf.mxu0
        %1732 = vmatprep.mubr.bf16.mxu0 0
        %1733 = vmatmul.mubr.bf16.gmra.mxu0 %v686
        %v1734 = vpop.f32.mrf.mxu0
        %v1735 = vadd.f32 %v1638, %v1734
        %v1736 = vpop.f32.mrf.mxu0
        %v1737 = vpop.f32.mrf.mxu0
        %v1738 = vadd.f32 %v1641, %v1737
        %v1739 = vpop.f32.mrf.mxu0
        %1740 = vmatprep.mubr.bf16.mxu0 0
        %1741 = vmatmul.mubr.bf16.gmra.mxu0 %v687
        %v1742 = vpop.f32.mrf.mxu0
        %v1743 = vadd.f32 %v1646, %v1742
        %v1744 = vpop.f32.mrf.mxu0
        %v1745 = vpop.f32.mrf.mxu0
        %v1746 = vadd.f32 %v1649, %v1745
        %v1747 = vpop.f32.mrf.mxu0
        %1748 = vmatprep.mubr.bf16.mxu0 0
        %1749 = vmatmul.mubr.bf16.gmra.mxu0 %v688
        %v1750 = vpop.f32.mrf.mxu0
        %v1751 = vadd.f32 %v1654, %v1750
        %v1752 = vpop.f32.mrf.mxu0
        %v1753 = vpop.f32.mrf.mxu0
        %v1754 = vadd.f32 %v1657, %v1753
        %v1755 = vpop.f32.mrf.mxu0
        %1756 = vmatprep.mubr.bf16.mxu0 0
        %1757 = vmatmul.mubr.bf16.gmra.mxu0 %v699
        %v1758 = vpop.f32.mrf.mxu0
        %v1759 = vadd.f32 %v1662, %v1758
        %v1760 = vpop.f32.mrf.mxu0
        %v1761 = vpop.f32.mrf.mxu0
        %v1762 = vadd.f32 %v1665, %v1761
        %v1763 = vpop.f32.mrf.mxu0
        %1764 = vmatprep.mubr.bf16.mxu0 0
        %1765 = vmatmul.mubr.bf16.gmra.mxu0 %v703
        %v1766 = vpop.f32.mrf.mxu0
        %v1767 = vadd.f32 %v1670, %v1766
        %v1768 = vpop.f32.mrf.mxu0
        %v1769 = vpop.f32.mrf.mxu0
        %v1770 = vadd.f32 %v1673, %v1769
        %v1771 = vpop.f32.mrf.mxu0
        %1772 = vdwg.mxu0
        %v1773 = vmax.f32 %v1711, 0.0
        %v1774 = vmax.f32 %v1714, 0.0
        %v1775 = vmax.f32 %v1719, 0.0
        %v1776 = vmax.f32 %v1722, 0.0
        %v1777 = vmax.f32 %v1727, 0.0
        %v1778 = vmax.f32 %v1730, 0.0
        %v1779 = vmax.f32 %v1735, 0.0
        %v1780 = vmax.f32 %v1738, 0.0
        %v1781 = vmax.f32 %v1743, 0.0
        %v1782 = vmax.f32 %v1746, 0.0
        %v1783 = vmax.f32 %v1751, 0.0
        %v1784 = vmax.f32 %v1754, 0.0
        %v1785 = vmax.f32 %v1759, 0.0
        %v1786 = vmax.f32 %v1762, 0.0
        %v1787 = vmax.f32 %v1767, 0.0
        %v1788 = vmax.f32 %v1770, 0.0
        %1789 = vst [vmem:[%s177] sm:$0xff] %v1773
        %1790 = vst [vmem:[%s177 + $0x8] sm:$0xff] %v1774
        %1791 = vst [vmem:[%s177 + $0x10] sm:$0xff] %v1775
        %1792 = vst [vmem:[%s177 + $0x18] sm:$0xff] %v1776
        %1793 = vst [vmem:[%s177 + $0x20] sm:$0xff] %v1777
        %1794 = vst [vmem:[%s177 + $0x28] sm:$0xff] %v1778
        %1795 = vst [vmem:[%s177 + $0x30] sm:$0xff] %v1779
        %1796 = vst [vmem:[%s177 + $0x38] sm:$0xff] %v1780
        %1797 = vst [vmem:[%s177 + $0x40] sm:$0xff] %v1781
        %1798 = vst [vmem:[%s177 + $0x48] sm:$0xff] %v1782
        %1799 = vst [vmem:[%s177 + $0x50] sm:$0xff] %v1783
        %1800 = vst [vmem:[%s177 + $0x58] sm:$0xff] %v1784
        %1801 = vst [vmem:[%s177 + $0x60] sm:$0xff] %v1785
        %1802 = vst [vmem:[%s177 + $0x68] sm:$0xff] %v1786
        %1803 = vst [vmem:[%s177 + $0x70] sm:$0xff] %v1787
        %1804 = vst [vmem:[%s177 + $0x78] sm:$0xff] %v1788
        %s1805 = sand.u32 %s107, 1
        %s1806 = scalar_lea.sflag [#allocation3], %s1805
        %s1807 = sand.u32 %s107, 1
        %s1808 = smul.addr %s1807, 128
        %s1809 = scalar_lea.vmem [#allocation2], %s1808
        // Predicated region
        $region33: #{tpu_custom_call.1} parent=31 // pred_check
          %p1810 = pneg %p117
        $region34: #{tpu_custom_call.1} parent=31 // pred_check_branch
          %1812 = sbr.rel (%p1810) target = $region36
        $region35: #{tpu_custom_call.1} parent=31 // pred_region
          %s1813 = smul.u32 8, %s22
          %s1815 = ssub.s32 2048, 2048
          %1816 = vsyncadd %s1806, %s1815
          %s1817 = smul.addr %s1813, 2
          %s1818 = smul.addr %s21, 32
          %s1819 = sadd.s32 %s1817, %s1818
          %s1820 = smul.addr %s1819, 128
          %s1821 = scalar_lea.hbm %s3, %s1820
          %s1822 = sshll.u32 %s1809, 4
          %s1823 = int_to_ptr.vmem [resolvable:$true] %s1822
          %1828 = dma.vmem_to_hbm [thread:$0]  %s1823, 2048, %s1821, %s1806, 128, 128, 8
        $region36: #{tpu_custom_call.1} parent=31 // pred_fallthru
          _
      $region32: #{tpu_custom_call.1} parent=5 // pred_fallthru
        _
      %p1829 = scmp.le.s32.totalorder 2, %s12
      // Predicated region
      $region37: #{tpu_custom_call.1} parent=5 // pred_check
        %p1830 = pneg %p1829
      $region38: #{tpu_custom_call.1} parent=5 // pred_check_branch
        %1832 = sbr.rel (%p1830) target = $region40
      $region39: #{tpu_custom_call.1} parent=5 // pred_region
        %s1833 = ssub.s32 %s12, 2
        // Predicated region
        $region41: #{tpu_custom_call.1} parent=39 // pred_check
          %p1834 = pneg %p123
        $region42: #{tpu_custom_call.1} parent=39 // pred_check_branch
          %1836 = sbr.rel (%p1834) target = $region44
        $region43: #{tpu_custom_call.1} parent=39 // pred_region
          %s1837 = sand.u32 %s108, 1
          %s1838 = scalar_lea.sflag [#allocation3], %s1837
          %s1839 = sand.u32 %s108, 1
          %s1840 = smul.addr %s1839, 128
          %s1841 = scalar_lea.vmem [#allocation2], %s1840
          %1842 = dma.done %s1838, 2048
        $region44: #{tpu_custom_call.1} parent=39 // pred_fallthru
          _
      $region40: #{tpu_custom_call.1} parent=5 // pred_fallthru
        _
    $region6: #{tpu_custom_call.1} parent=1 // loop_footer
      %s16 = sadd.s32 1, %s12
    $region7: #{tpu_custom_call.1} parent=1 // loop_footer_branch
      %11 = sbr.rel target = $region3
    $region8: #{tpu_custom_call.1} parent=1 // loop_exit
      _
    %1843 = vsyncpa [#allocation3], 1
    %s1844 = scalar_lea.sflag [#allocation3], 1
    %1845 = vsyncpa %s1844, 1

</llo_original>
